<compile_context>
chip_gen: v6e
topology: v6e:2x2x1
jax: 0.10.0
libtpu: 0.0.40
codegen_flags: <defaults>
</compile_context>

<pallas_src>
import functools

import jax
import jax.numpy as jnp
from jax.experimental import pallas as pl
from jax.experimental.pallas import tpu as pltpu


# ---------------------------------------------------------------------------
# Shared in-kernel helpers (all f32 activations after the projections)
# ---------------------------------------------------------------------------

def _masked_energy(qp, kp, g):
    """energy[n, h, t] = sum_{e in head h} qp[n, e] * kp[n, t, e].

    qp: [bn, E] (already 1/sqrt(E)-scaled), kp: [bn, T, E], g: [E, H] 0/1 mask.
    Returns [bn, H, T] with the sequence axis lane-dense for the softmax.
    """
    qg = qp[:, :, None] * g[None, :, :]                        # [bn, E, H]
    e_th = jnp.einsum("nte,neh->nth", kp, qg,
                      preferred_element_type=jnp.float32)      # [bn, T, H]
    return jnp.swapaxes(e_th, 1, 2)                            # [bn, H, T]


def _head_context_partial(p, vp):
    """ctx_h[n, h, e] = sum_t p[n, h, t] * vp[n, t, e]  (MXU, S-contraction)."""
    return jnp.einsum("nht,nte->nhe", p, vp,
                      preferred_element_type=jnp.float32)      # [bn, H, E]


def _collapse_heads(ctx_h, gt):
    """ctx[n, e] = ctx_h[n, head(e), e]  via the 0/1 mask gt: [H, E]."""
    return jnp.sum(ctx_h * gt[None, :, :], axis=1)             # [bn, E]


# ---------------------------------------------------------------------------
# Kernel bodies
# ---------------------------------------------------------------------------

def _fused_kernel(q_ref, k_ref, v_ref, wq_ref, wk_ref, wv_ref, wo_ref,
                  bo_ref, g_ref, gt_ref, out_ref, *, bn, seq, compute_dtype):
    """Full-S path: one grid step per batch block, residual fused in-kernel."""
    f32 = jnp.float32
    E = g_ref.shape[0]

    q = q_ref[...].reshape(bn, E)        # [bn, E]     (Lq == 1 -> single row)
    k = k_ref[...]                       # [bn, S, E]  compute_dtype
    v = v_ref[...]                       # [bn, S, E]  compute_dtype (+residual)

    # Per-head projections as block-diagonal [R,E]@[E,E] matmuls
    # (bf16 MXU when compute_dtype=bf16, f32 accumulation).
    qp = jnp.dot(q, wq_ref[...], preferred_element_type=f32)                 # [bn, E]
    kp = jnp.dot(k.reshape(bn * seq, E), wk_ref[...],
                 preferred_element_type=f32).reshape(bn, seq, E)             # [bn, S, E]
    vp = jnp.dot(v.reshape(bn * seq, E), wv_ref[...],
                 preferred_element_type=f32).reshape(bn, seq, E)             # [bn, S, E]

    energy = _masked_energy(qp, kp, g_ref[...])                 # [bn, H, S]
    m = jnp.max(energy, axis=-1, keepdims=True)
    p = jnp.exp(energy - m)
    l = jnp.sum(p, axis=-1, keepdims=True)
    att = p * pl.reciprocal(l, approx=False)
    ctx = _collapse_heads(_head_context_partial(att, vp), gt_ref[...])   # [bn, E]

    y = jnp.dot(ctx.astype(compute_dtype), wo_ref[...],
                preferred_element_type=f32) + bo_ref[...]       # [bn, E]

    # Broadcast the single attention row over the sequence + fused residual.
    out_ref[...] = (y[:, None, :] + v.astype(f32)).astype(out_ref.dtype)


def _tiled_kernel(q_ref, k_ref, v_ref, wq_ref, wk_ref, wv_ref, wo_ref,
                  bo_ref, g_ref, gt_ref, out_ref, m_sc, l_sc, ctx_sc,
                  *, bn, kv_blk, compute_dtype):
    """Large-S path: online softmax over a KV-sequence grid axis."""
    f32 = jnp.float32
    E = g_ref.shape[0]
    kv = pl.program_id(1)

    @pl.when(kv == 0)
    def _():
        m_sc[...] = jnp.full_like(m_sc, -jnp.inf)
        l_sc[...] = jnp.zeros_like(l_sc)
        ctx_sc[...] = jnp.zeros_like(ctx_sc)

    q = q_ref[...].reshape(bn, E)
    qp = jnp.dot(q, wq_ref[...], preferred_element_type=f32)    # tiny; per-step recompute
    kp = jnp.dot(k_ref[...].reshape(bn * kv_blk, E), wk_ref[...],
                 preferred_element_type=f32).reshape(bn, kv_blk, E)
    vp = jnp.dot(v_ref[...].reshape(bn * kv_blk, E), wv_ref[...],
                 preferred_element_type=f32).reshape(bn, kv_blk, E)

    e_blk = _masked_energy(qp, kp, g_ref[...])                  # [bn, H, Tk]
    m_prev = m_sc[...]
    m_new = jnp.maximum(m_prev, jnp.max(e_blk, axis=-1, keepdims=True))
    alpha = jnp.exp(m_prev - m_new)
    p = jnp.exp(e_blk - m_new)
    l_sc[...] = alpha * l_sc[...] + jnp.sum(p, axis=-1, keepdims=True)
    ctx_sc[...] = alpha * ctx_sc[...] + _head_context_partial(p, vp)
    m_sc[...] = m_new

    @pl.when(kv == pl.num_programs(1) - 1)
    def _():
        ctx_h = ctx_sc[...] * pl.reciprocal(l_sc[...], approx=False)
        ctx = _collapse_heads(ctx_h, gt_ref[...])               # [bn, E]
        y = jnp.dot(ctx.astype(compute_dtype), wo_ref[...],
                    preferred_element_type=f32) + bo_ref[...]
        out_ref[...] = y[:, None, :].astype(out_ref.dtype)


# ---------------------------------------------------------------------------
# VMEM budgeting / tile selection
# ---------------------------------------------------------------------------

def _vmem_capacity_bytes():
    try:
        cap = int(pltpu.get_tpu_info().vmem_capacity_bytes)
    except Exception:
        cap = 64 * 1024 * 1024      # conservative (v7x) fallback
    return max(cap, 16 * 1024 * 1024)


def _divisors_desc(n):
    return [d for d in range(n, 0, -1) if n % d == 0]


def _weight_bytes(E, heads, cd_bytes, weight_buffers):
    return weight_buffers * 4 * E * E * cd_bytes + (E + 2 * heads * E) * 4


def _fused_step_bytes(bn, S, E, heads, cd_bytes, out_bytes, weight_buffers):
    io = bn * S * E * (2 * 2 * cd_bytes + 2 * out_bytes) + bn * E * 2 * cd_bytes
    inter = 3 * bn * S * E * 4                    # kp, vp + y-broadcast/residual temp (f32)
    small = 3 * bn * heads * S * 4 + 3 * bn * heads * E * 4 + 2 * bn * E * 4
    return io + inter + small + _weight_bytes(E, heads, cd_bytes, weight_buffers)


def _tiled_step_bytes(bn, tk, E, heads, cd_bytes, weight_buffers):
    io = bn * tk * E * 2 * 2 * cd_bytes + bn * E * 2 * (cd_bytes + 4)
    inter = 2 * bn * tk * E * 4                   # kp, vp (f32)
    small = 3 * bn * heads * tk * 4 + 3 * bn * heads * E * 4
    scratch = bn * heads * (E + 2) * 4            # m, l, ctx accumulators
    return io + inter + small + scratch + _weight_bytes(E, heads, cd_bytes, weight_buffers)


def _pick_fused_bn(N, S, E, heads, cd_bytes, out_bytes, budget, weight_buffers):
    for bn in _divisors_desc(N):
        if N > 1 and N // bn < 2:      # keep >= 2 parallel grid steps (v7x: 2 TCs)
            continue
        if _fused_step_bytes(bn, S, E, heads, cd_bytes, out_bytes,
                             weight_buffers) <= budget:
            return bn
    return None                         # even bn=1 does not fit -> KV-tiled path


def _pick_tiled_blocks(N, S, E, heads, cd_bytes, budget, weight_buffers,
                       kv_block=None):
    if kv_block is not None:
        kv_candidates = [kv_block]
    else:
        kv_candidates = [d for d in _divisors_desc(S)
                         if (d % 8 == 0 or d == S) and d <= 1024]
        if not kv_candidates:
            kv_candidates = [S]
    for tk in kv_candidates:
        for bn in _divisors_desc(N):
            if N > 1 and N // bn < 2:
                continue
            if _tiled_step_bytes(bn, tk, E, heads, cd_bytes,
                                 weight_buffers) <= budget:
                return bn, tk
    return 1, kv_candidates[-1]


def _call_with_fallback(call, single_buffer):
    if not single_buffer:
        return call(False)
    try:
        return call(True)
    except Exception:
        # pl.Buffered(1) single-buffering of the resident weights is not
        # accepted on every jax/Mosaic version; retry with the default
        # double-buffered specs instead of failing the whole kernel.
        return call(False)


# ---------------------------------------------------------------------------
# Parameters & wrapper
# ---------------------------------------------------------------------------

def init_params(key, embed_size, heads):
    d = embed_size // heads
    ks = jax.random.split(key, 5)

    def lin(k, fan_in, shape):
        bound = 1.0 / (fan_in ** 0.5)
        return jax.random.uniform(k, shape, jnp.float32, -bound, bound)

    return {
        "wv": lin(ks[0], d, (d, d)),                    # PyTorch Linear weight [out, in]
        "wk": lin(ks[1], d, (d, d)),
        "wq": lin(ks[2], d, (d, d)),
        "wo": lin(ks[3], embed_size, (embed_size, embed_size)),
        "bo": lin(ks[4], embed_size, (embed_size,)),
    }


def cross_attention_pallas(values, keys, query, params, heads, *,
                           compute_dtype=jnp.float32,
                           out_dtype=jnp.float32,
                           force_kv_tiling=False,
                           kv_block_size=None,
                           single_buffer_weights=True):
    """values, keys: [S, N, E]; query: [1, N, E] (the module requires Lq == 1).

    compute_dtype: dtype of the big activations / weights fed to the MXU.
      Use jnp.bfloat16 for production shapes (halves k/v HBM traffic and runs
      the dominant projections at the bf16 MXU rate); f32 is the default so
      the forward matches the PyTorch module at tight tolerance.
    """
    S, N, E = values.shape
    Lq = query.shape[0]
    D = E // heads
    assert D * heads == E, "embed_size must be divisible by heads"
    # `out.permute(1,0,2) + ori_v` only works when the repeated query length
    # equals the value length, i.e. Lq == 1 — which lets us compute attention
    # for a single query row per batch element and broadcast the result.
    assert Lq == 1, "CrossAttention residual add requires query seq len == 1"

    cd = jnp.dtype(compute_dtype)
    out_dt = jnp.dtype(out_dtype)
    f32 = jnp.float32

    # Batch-major activations (lane axis = E).  k/v/q cast to the compute
    # dtype HERE so the kernel DMAs bf16 slabs when compute_dtype=bf16.
    v_b = jnp.transpose(values, (1, 0, 2)).astype(cd)    # [N, S, E]
    k_b = jnp.transpose(keys, (1, 0, 2)).astype(cd)      # [N, S, E]
    q_b = jnp.transpose(query, (1, 0, 2)).astype(cd)     # [N, 1, E]

    # Block-diagonal per-head projection weights (PyTorch Linear is x @ W.T);
    # the 1/sqrt(E) softmax scale is folded into Wq once, wrapper side.
    def blockdiag(w):
        return jnp.kron(jnp.eye(heads, dtype=f32), w.T.astype(f32))

    scale = 1.0 / (E ** 0.5)
    wq_bd = (blockdiag(params["wq"]) * scale).astype(cd)   # [E, E]
    wk_bd = blockdiag(params["wk"]).astype(cd)             # [E, E]
    wv_bd = blockdiag(params["wv"]).astype(cd)             # [E, E]
    wo_t = params["wo"].T.astype(cd)                       # [E, E]
    bo = params["bo"].reshape(1, E).astype(f32)            # [1, E]

    # 0/1 head-membership masks: g[e, h] = 1 iff lane e belongs to head h.
    g = (jnp.arange(E)[:, None] // D == jnp.arange(heads)[None, :]).astype(f32)
    gt = g.T                                               # [H, E]

    # Generation-aware VMEM budgeting (v5e/v6e: 128 MiB, v7x: 64 MiB).
    cap = _vmem_capacity_bytes()
    budget = int(cap * 0.70)        # for tile-size selection (headroom left)
    vmem_limit = int(cap * 0.85)    # Mosaic scoped-VMEM cap
    wbuf = 1 if single_buffer_weights else 2

    bn_fused = _pick_fused_bn(N, S, E, heads, cd.itemsize, out_dt.itemsize,
                              budget, wbuf)
    use_tiled = force_kv_tiling or (bn_fused is None)

    weight_args = (wq_bd, wk_bd, wv_bd, wo_t, bo, g, gt)

    def weight_specs(single_buffer):
        def const(shape):
            kwargs = {}
            if single_buffer and hasattr(pl, "Buffered"):
                kwargs["pipeline_mode"] = pl.Buffered(1)   # never re-fetched
            zeros = (0,) * len(shape)
            return pl.BlockSpec(shape, lambda *_: zeros, **kwargs)
        return [const((E, E)), const((E, E)), const((E, E)), const((E, E)),
                const((1, E)), const((E, heads)), const((heads, E))]

    if not use_tiled:
        # ---------------- fused path (full S per step, residual in-kernel) --
        bn = bn_fused
        grid = (N // bn,)
        kernel = functools.partial(_fused_kernel, bn=bn, seq=S, compute_dtype=cd)

        def call(single_buffer):
            return pl.pallas_call(
                kernel,
                out_shape=jax.ShapeDtypeStruct((N, S, E), out_dt),
                grid_spec=pltpu.PrefetchScalarGridSpec(
                    num_scalar_prefetch=0,
                    grid=grid,
                    in_specs=[
                        pl.BlockSpec((bn, 1, E), lambda n: (n, 0, 0)),   # q
                        pl.BlockSpec((bn, S, E), lambda n: (n, 0, 0)),   # k
                        pl.BlockSpec((bn, S, E), lambda n: (n, 0, 0)),   # v (+residual)
                        *weight_specs(single_buffer),
                    ],
                    out_specs=pl.BlockSpec((bn, S, E), lambda n: (n, 0, 0)),
                ),
                compiler_params=pltpu.CompilerParams(
                    dimension_semantics=("parallel",),
                    vmem_limit_bytes=vmem_limit,
                ),
            )(q_b, k_b, v_b, *weight_args)

        out_b = _call_with_fallback(call, single_buffer_weights)   # [N, S, E]
        return jnp.transpose(out_b, (1, 0, 2))

    # -------------------- KV-tiled online-softmax path ----------------------
    if kv_block_size is not None:
        tk = int(kv_block_size)
        assert S % tk == 0 and (tk % 8 == 0 or tk == S), \
            "kv_block_size must divide S and be a multiple of 8 (or equal S)"
        bn, _ = _pick_tiled_blocks(N, S, E, heads, cd.itemsize, budget, wbuf,
                                   kv_block=tk)
    else:
        bn, tk = _pick_tiled_blocks(N, S, E, heads, cd.itemsize, budget, wbuf)
    grid = (N // bn, S // tk)
    kernel = functools.partial(_tiled_kernel, bn=bn, kv_blk=tk, compute_dtype=cd)

    def call(single_buffer):
        return pl.pallas_call(
            kernel,
            out_shape=jax.ShapeDtypeStruct((N, 1, E), f32),
            grid_spec=pltpu.PrefetchScalarGridSpec(
                num_scalar_prefetch=0,
                grid=grid,
                in_specs=[
                    pl.BlockSpec((bn, 1, E), lambda n, s: (n, 0, 0)),    # q
                    pl.BlockSpec((bn, tk, E), lambda n, s: (n, s, 0)),   # k block
                    pl.BlockSpec((bn, tk, E), lambda n, s: (n, s, 0)),   # v block
                    *weight_specs(single_buffer),
                ],
                out_specs=pl.BlockSpec((bn, 1, E), lambda n, s: (n, 0, 0)),
                scratch_shapes=[
                    pltpu.VMEM((bn, heads, 1), f32),    # running max m
                    pltpu.VMEM((bn, heads, 1), f32),    # running denom l
                    pltpu.VMEM((bn, heads, E), f32),    # running context
                ],
            ),
            compiler_params=pltpu.CompilerParams(
                dimension_semantics=("parallel", "arbitrary"),
                vmem_limit_bytes=vmem_limit,
            ),
        )(q_b, k_b, v_b, *weight_args)

    y = _call_with_fallback(call, single_buffer_weights)     # [N, 1, E]  f32
    # Broadcast-over-sequence residual add on the ORIGINAL f32 values: one
    # fused XLA elementwise pass; keeps the kernel's working set bounded.
    out = values + jnp.transpose(y, (1, 0, 2))                # [S, N, E]
    return out.astype(out_dt)


# ---------------------------------------------------------------------------
# Pure-JAX reference (mirrors the PyTorch forward) & demo
# ---------------------------------------------------------------------------

def cross_attention_reference(values, keys, query, params, heads):
    S, N, E = values.shape
    D = E // heads
    v_b = jnp.transpose(values, (1, 0, 2))
    k_b = jnp.transpose(keys, (1, 0, 2))
    q_b = jnp.transpose(query, (1, 0, 2))
    q_b = jnp.repeat(q_b, repeats=v_b.shape[1], axis=1)
    Q = q_b.shape[1]

    vh = v_b.reshape(N, S, heads, D) @ params["wv"].T
    kh = k_b.reshape(N, S, heads, D) @ params["wk"].T
    qh = q_b.reshape(N, Q, heads, D) @ params["wq"].T
    energy = jnp.einsum("nqhd,nkhd->nhqk", qh, kh)
    att = jax.nn.softmax(energy / (E ** 0.5), axis=3)
    out = jnp.einsum("nhql,nlhd->nqhd", att, vh).reshape(N, Q, heads * D)
    out = out @ params["wo"].T + params["bo"]
    return jnp.transpose(out, (1, 0, 2)) + values


if __name__ == "__main__":
    embed_size, heads = 32, 4
    S, N, Lq = 8, 2, 1   # values/keys seq len, batch, query seq len (must be 1)

    key = jax.random.PRNGKey(0)
    k_params, k_v, k_k, k_q = jax.random.split(key, 4)
    params = init_params(k_params, embed_size, heads)

    values = jax.random.normal(k_v, (S, N, embed_size), jnp.float32)
    keys = jax.random.normal(k_k, (S, N, embed_size), jnp.float32)
    query = jax.random.normal(k_q, (Lq, N, embed_size), jnp.float32)
    ref = cross_attention_reference(values, keys, query, params, heads)

    # 1) fused path, f32 compute (tight check vs. the PyTorch-equivalent ref).
    out = jax.block_until_ready(
        cross_attention_pallas(values, keys, query, params, heads))
    assert out.shape == (S, N, embed_size)
    assert jnp.allclose(out, ref, rtol=1e-4, atol=1e-4), "fused f32 mismatch"

    # 2) KV-tiled online-softmax path, f32 (S=16 -> 2 kv steps), tight check.
    S2 = 16
    values2 = jax.random.normal(jax.random.PRNGKey(1), (S2, N, embed_size), jnp.float32)
    keys2 = jax.random.normal(jax.random.PRNGKey(2), (S2, N, embed_size), jnp.float32)
    ref2 = cross_attention_reference(values2, keys2, query, params, heads)
    out2 = jax.block_until_ready(
        cross_attention_pallas(values2, keys2, query, params, heads,
                               force_kv_tiling=True, kv_block_size=8))
    assert jnp.allclose(out2, ref2, rtol=1e-4, atol=1e-4), "tiled f32 mismatch"

    # 3) bf16 compute knob (production default per perf review), loose check.
    out3 = jax.block_until_ready(
        cross_attention_pallas(values, keys, query, params, heads,
                               compute_dtype=jnp.bfloat16))
    assert jnp.allclose(out3, ref, rtol=5e-2, atol=5e-2), "fused bf16 mismatch"

    print("KERNEL_OK")
</pallas_src>

<mosaic_0001>
module attributes {stable_mosaic.version = 11 : i64} {
  func.func @_fused_kernel(%arg0: i32, %arg1: memref<1x1x32xf32, #tpu.memory_space<vmem>>, %arg2: memref<1x8x32xf32, #tpu.memory_space<vmem>>, %arg3: memref<1x8x32xf32, #tpu.memory_space<vmem>>, %arg4: memref<32x32xf32, #tpu.memory_space<vmem>>, %arg5: memref<32x32xf32, #tpu.memory_space<vmem>>, %arg6: memref<32x32xf32, #tpu.memory_space<vmem>>, %arg7: memref<32x32xf32, #tpu.memory_space<vmem>>, %arg8: memref<1x32xf32, #tpu.memory_space<vmem>>, %arg9: memref<32x4xf32, #tpu.memory_space<vmem>>, %arg10: memref<4x32xf32, #tpu.memory_space<vmem>>, %arg11: memref<1x8x32xf32, #tpu.memory_space<vmem>>) attributes {dimension_semantics = [#tpu.dimension_semantics<parallel>], iteration_bounds = array<i64: 2>, scalar_prefetch = 0 : i64, scratch_operands = 0 : i64, tpu.core_type = #tpu.core_type<tc>, window_params = [{transform_indices = @transform_0, window_bounds = array<i64: 1, 1, 32>}, {transform_indices = @transform_1, window_bounds = array<i64: 1, 8, 32>}, {transform_indices = @transform_2, window_bounds = array<i64: 1, 8, 32>}, {pipeline_mode = #tpu.pipeline_mode<synchronous>, transform_indices = @transform_3, window_bounds = array<i64: 32, 32>}, {pipeline_mode = #tpu.pipeline_mode<synchronous>, transform_indices = @transform_4, window_bounds = array<i64: 32, 32>}, {pipeline_mode = #tpu.pipeline_mode<synchronous>, transform_indices = @transform_5, window_bounds = array<i64: 32, 32>}, {pipeline_mode = #tpu.pipeline_mode<synchronous>, transform_indices = @transform_6, window_bounds = array<i64: 32, 32>}, {pipeline_mode = #tpu.pipeline_mode<synchronous>, transform_indices = @transform_7, window_bounds = array<i64: 1, 32>}, {pipeline_mode = #tpu.pipeline_mode<synchronous>, transform_indices = @transform_8, window_bounds = array<i64: 32, 4>}, {pipeline_mode = #tpu.pipeline_mode<synchronous>, transform_indices = @transform_9, window_bounds = array<i64: 4, 32>}, {transform_indices = @transform_10, window_bounds = array<i64: 1, 8, 32>}]} {
    %c0 = arith.constant 0 : index
    %c0_0 = arith.constant 0 : index
    %c0_1 = arith.constant 0 : index
    %0 = vector.load %arg1[%c0, %c0_0, %c0_1] : memref<1x1x32xf32, #tpu.memory_space<vmem>>, vector<1x1x32xf32>
    %1 = vector.shape_cast %0 : vector<1x1x32xf32> to vector<1x32xf32>
    %c0_2 = arith.constant 0 : index
    %c0_3 = arith.constant 0 : index
    %c0_4 = arith.constant 0 : index
    %2 = vector.load %arg2[%c0_2, %c0_3, %c0_4] : memref<1x8x32xf32, #tpu.memory_space<vmem>>, vector<1x8x32xf32>
    %c0_5 = arith.constant 0 : index
    %c0_6 = arith.constant 0 : index
    %c0_7 = arith.constant 0 : index
    %3 = vector.load %arg3[%c0_5, %c0_6, %c0_7] : memref<1x8x32xf32, #tpu.memory_space<vmem>>, vector<1x8x32xf32>
    %c0_8 = arith.constant 0 : index
    %c0_9 = arith.constant 0 : index
    %4 = vector.load %arg4[%c0_8, %c0_9] : memref<32x32xf32, #tpu.memory_space<vmem>>, vector<32x32xf32>
    %cst = arith.constant dense<0.000000e+00> : vector<1x32xf32>
    %5 = tpu.matmul %1, %4, %cst {dimension_numbers = #tpu.dot_dimension_numbers<[1], [0], [0], [1], [0, 0, 1, 1], [], []>} : vector<1x32xf32>, vector<32x32xf32>, vector<1x32xf32> -> vector<1x32xf32>
    %6 = vector.shape_cast %2 : vector<1x8x32xf32> to vector<8x32xf32>
    %c0_10 = arith.constant 0 : index
    %c0_11 = arith.constant 0 : index
    %7 = vector.load %arg5[%c0_10, %c0_11] : memref<32x32xf32, #tpu.memory_space<vmem>>, vector<32x32xf32>
    %cst_12 = arith.constant dense<0.000000e+00> : vector<8x32xf32>
    %8 = tpu.matmul %6, %7, %cst_12 {dimension_numbers = #tpu.dot_dimension_numbers<[1], [0], [0], [1], [0, 0, 1, 1], [], []>} : vector<8x32xf32>, vector<32x32xf32>, vector<8x32xf32> -> vector<8x32xf32>
    %9 = vector.shape_cast %8 : vector<8x32xf32> to vector<1x8x32xf32>
    %10 = vector.shape_cast %3 : vector<1x8x32xf32> to vector<8x32xf32>
    %c0_13 = arith.constant 0 : index
    %c0_14 = arith.constant 0 : index
    %11 = vector.load %arg6[%c0_13, %c0_14] : memref<32x32xf32, #tpu.memory_space<vmem>>, vector<32x32xf32>
    %cst_15 = arith.constant dense<0.000000e+00> : vector<8x32xf32>
    %12 = tpu.matmul %10, %11, %cst_15 {dimension_numbers = #tpu.dot_dimension_numbers<[1], [0], [0], [1], [0, 0, 1, 1], [], []>} : vector<8x32xf32>, vector<32x32xf32>, vector<8x32xf32> -> vector<8x32xf32>
    %13 = vector.shape_cast %12 : vector<8x32xf32> to vector<1x8x32xf32>
    %c0_16 = arith.constant 0 : index
    %c0_17 = arith.constant 0 : index
    %14 = vector.load %arg9[%c0_16, %c0_17] : memref<32x4xf32, #tpu.memory_space<vmem>>, vector<32x4xf32>
    %15 = vector.shape_cast %5 : vector<1x32xf32> to vector<1x32x1xf32>
    %16 = vector.shape_cast %14 : vector<32x4xf32> to vector<1x32x4xf32>
    %17 = vector.broadcast %15 : vector<1x32x1xf32> to vector<1x32x4xf32>
    %18 = arith.mulf %17, %16 : vector<1x32x4xf32>
    "tpu.trace_start"() <{level = 10 : i32, message = "nte,neh->nth"}> : () -> ()
    %cst_18 = arith.constant dense<0.000000e+00> : vector<1x8x4xf32>
    %19 = tpu.matmul %9, %18, %cst_18 {dimension_numbers = #tpu.dot_dimension_numbers<[2], [1], [1], [2], [0, 0, 0, 1, 1, 2], [0], [0]>} : vector<1x8x32xf32>, vector<1x32x4xf32>, vector<1x8x4xf32> -> vector<1x8x4xf32>
    "tpu.trace_stop"() : () -> ()
    %20 = tpu.transpose %19, [0, 2, 1] : vector<1x8x4xf32> -> vector<1x4x8xf32>
    %cst_19 = arith.constant dense<0xFF800000> : vector<1x4xf32>
    %21 = vector.multi_reduction <maximumf>, %20, %cst_19 [2] : vector<1x4x8xf32> to vector<1x4xf32>
    %22 = vector.shape_cast %21 : vector<1x4xf32> to vector<1x4x1xf32>
    %23 = vector.broadcast %22 : vector<1x4x1xf32> to vector<1x4x8xf32>
    %24 = arith.subf %20, %23 : vector<1x4x8xf32>
    %25 = math.exp %24 : vector<1x4x8xf32>
    %cst_20 = arith.constant dense<0.000000e+00> : vector<1x4xf32>
    %26 = vector.multi_reduction <add>, %25, %cst_20 [2] : vector<1x4x8xf32> to vector<1x4xf32>
    %27 = vector.shape_cast %26 : vector<1x4xf32> to vector<1x4x1xf32>
    %28 = tpu.reciprocal %27 : vector<1x4x1xf32> -> vector<1x4x1xf32>
    %29 = vector.broadcast %28 : vector<1x4x1xf32> to vector<1x4x8xf32>
    %30 = arith.mulf %25, %29 : vector<1x4x8xf32>
    "tpu.trace_start"() <{level = 10 : i32, message = "nht,nte->nhe"}> : () -> ()
    %cst_21 = arith.constant dense<0.000000e+00> : vector<1x4x32xf32>
    %31 = tpu.matmul %30, %13, %cst_21 {dimension_numbers = #tpu.dot_dimension_numbers<[2], [1], [1], [2], [0, 0, 0, 1, 1, 2], [0], [0]>} : vector<1x4x8xf32>, vector<1x8x32xf32>, vector<1x4x32xf32> -> vector<1x4x32xf32>
    "tpu.trace_stop"() : () -> ()
    %c0_22 = arith.constant 0 : index
    %c0_23 = arith.constant 0 : index
    %32 = vector.load %arg10[%c0_22, %c0_23] : memref<4x32xf32, #tpu.memory_space<vmem>>, vector<4x32xf32>
    %33 = vector.shape_cast %32 : vector<4x32xf32> to vector<1x4x32xf32>
    %34 = arith.mulf %31, %33 : vector<1x4x32xf32>
    %cst_24 = arith.constant dense<0.000000e+00> : vector<1x32xf32>
    %35 = vector.multi_reduction <add>, %34, %cst_24 [1] : vector<1x4x32xf32> to vector<1x32xf32>
    %c0_25 = arith.constant 0 : index
    %c0_26 = arith.constant 0 : index
    %36 = vector.load %arg7[%c0_25, %c0_26] : memref<32x32xf32, #tpu.memory_space<vmem>>, vector<32x32xf32>
    %cst_27 = arith.constant dense<0.000000e+00> : vector<1x32xf32>
    %37 = tpu.matmul %35, %36, %cst_27 {dimension_numbers = #tpu.dot_dimension_numbers<[1], [0], [0], [1], [0, 0, 1, 1], [], []>} : vector<1x32xf32>, vector<32x32xf32>, vector<1x32xf32> -> vector<1x32xf32>
    %c0_28 = arith.constant 0 : index
    %c0_29 = arith.constant 0 : index
    %38 = vector.load %arg8[%c0_28, %c0_29] : memref<1x32xf32, #tpu.memory_space<vmem>>, vector<1x32xf32>
    %39 = arith.addf %37, %38 : vector<1x32xf32>
    %40 = vector.shape_cast %39 : vector<1x32xf32> to vector<1x1x32xf32>
    %41 = vector.broadcast %40 : vector<1x1x32xf32> to vector<1x8x32xf32>
    %42 = arith.addf %41, %3 : vector<1x8x32xf32>
    %c0_30 = arith.constant 0 : index
    %c0_31 = arith.constant 0 : index
    %c0_32 = arith.constant 0 : index
    %43 = vector.load %arg11[%c0_30, %c0_31, %c0_32] : memref<1x8x32xf32, #tpu.memory_space<vmem>>, vector<1x8x32xf32>
    tpu.vector_store %arg11[%c0_30, %c0_31, %c0_32], %42 {strides = array<i32>} : memref<1x8x32xf32, #tpu.memory_space<vmem>>, vector<1x8x32xf32>,
    return
  }
  func.func @transform_0(%arg0: i32) -> (i32, i32, i32) {
    %c0_i32 = arith.constant 0 : i32
    %c0_i32_0 = arith.constant 0 : i32
    %c0_i32_1 = arith.constant 0 : i32
    return %arg0, %c0_i32, %c0_i32_0 : i32, i32, i32
  }
  func.func @transform_1(%arg0: i32) -> (i32, i32, i32) {
    %c0_i32 = arith.constant 0 : i32
    %c0_i32_0 = arith.constant 0 : i32
    %c0_i32_1 = arith.constant 0 : i32
    return %arg0, %c0_i32, %c0_i32_0 : i32, i32, i32
  }
  func.func @transform_2(%arg0: i32) -> (i32, i32, i32) {
    %c0_i32 = arith.constant 0 : i32
    %c0_i32_0 = arith.constant 0 : i32
    %c0_i32_1 = arith.constant 0 : i32
    return %arg0, %c0_i32, %c0_i32_0 : i32, i32, i32
  }
  func.func @transform_3(%arg0: i32) -> (i32, i32) {
    %c0_i32 = arith.constant 0 : i32
    %c0_i32_0 = arith.constant 0 : i32
    %c0_i32_1 = arith.constant 0 : i32
    return %c0_i32, %c0_i32_0 : i32, i32
  }
  func.func @transform_4(%arg0: i32) -> (i32, i32) {
    %c0_i32 = arith.constant 0 : i32
    %c0_i32_0 = arith.constant 0 : i32
    %c0_i32_1 = arith.constant 0 : i32
    return %c0_i32, %c0_i32_0 : i32, i32
  }
  func.func @transform_5(%arg0: i32) -> (i32, i32) {
    %c0_i32 = arith.constant 0 : i32
    %c0_i32_0 = arith.constant 0 : i32
    %c0_i32_1 = arith.constant 0 : i32
    return %c0_i32, %c0_i32_0 : i32, i32
  }
  func.func @transform_6(%arg0: i32) -> (i32, i32) {
    %c0_i32 = arith.constant 0 : i32
    %c0_i32_0 = arith.constant 0 : i32
    %c0_i32_1 = arith.constant 0 : i32
    return %c0_i32, %c0_i32_0 : i32, i32
  }
  func.func @transform_7(%arg0: i32) -> (i32, i32) {
    %c0_i32 = arith.constant 0 : i32
    %c0_i32_0 = arith.constant 0 : i32
    %c0_i32_1 = arith.constant 0 : i32
    return %c0_i32, %c0_i32_0 : i32, i32
  }
  func.func @transform_8(%arg0: i32) -> (i32, i32) {
    %c0_i32 = arith.constant 0 : i32
    %c0_i32_0 = arith.constant 0 : i32
    %c0_i32_1 = arith.constant 0 : i32
    return %c0_i32, %c0_i32_0 : i32, i32
  }
  func.func @transform_9(%arg0: i32) -> (i32, i32) {
    %c0_i32 = arith.constant 0 : i32
    %c0_i32_0 = arith.constant 0 : i32
    %c0_i32_1 = arith.constant 0 : i32
    return %c0_i32, %c0_i32_0 : i32, i32
  }
  func.func @transform_10(%arg0: i32) -> (i32, i32, i32) {
    %c0_i32 = arith.constant 0 : i32
    %c0_i32_0 = arith.constant 0 : i32
    %c0_i32_1 = arith.constant 0 : i32
    return %arg0, %c0_i32, %c0_i32_0 : i32, i32, i32
  }
}

module attributes {stable_mosaic.version = 11 : i64} {
  func.func @_fused_kernel(%arg0: i32, %arg1: memref<1x1x32xf32, #tpu.memory_space<vmem>>, %arg2: memref<1x8x32xf32, #tpu.memory_space<vmem>>, %arg3: memref<1x8x32xf32, #tpu.memory_space<vmem>>, %arg4: memref<32x32xf32, #tpu.memory_space<vmem>>, %arg5: memref<32x32xf32, #tpu.memory_space<vmem>>, %arg6: memref<32x32xf32, #tpu.memory_space<vmem>>, %arg7: memref<32x32xf32, #tpu.memory_space<vmem>>, %arg8: memref<1x32xf32, #tpu.memory_space<vmem>>, %arg9: memref<32x4xf32, #tpu.memory_space<vmem>>, %arg10: memref<4x32xf32, #tpu.memory_space<vmem>>, %arg11: memref<1x8x32xf32, #tpu.memory_space<vmem>>) attributes {dimension_semantics = [#tpu.dimension_semantics<parallel>], iteration_bounds = array<i64: 2>, scalar_prefetch = 0 : i64, scratch_operands = 0 : i64, tpu.core_type = #tpu.core_type<tc>, window_params = [{transform_indices = @transform_0, window_bounds = array<i64: 1, 1, 32>}, {transform_indices = @transform_1, window_bounds = array<i64: 1, 8, 32>}, {transform_indices = @transform_2, window_bounds = array<i64: 1, 8, 32>}, {pipeline_mode = #tpu.pipeline_mode<synchronous>, transform_indices = @transform_3, window_bounds = array<i64: 32, 32>}, {pipeline_mode = #tpu.pipeline_mode<synchronous>, transform_indices = @transform_4, window_bounds = array<i64: 32, 32>}, {pipeline_mode = #tpu.pipeline_mode<synchronous>, transform_indices = @transform_5, window_bounds = array<i64: 32, 32>}, {pipeline_mode = #tpu.pipeline_mode<synchronous>, transform_indices = @transform_6, window_bounds = array<i64: 32, 32>}, {pipeline_mode = #tpu.pipeline_mode<synchronous>, transform_indices = @transform_7, window_bounds = array<i64: 1, 32>}, {pipeline_mode = #tpu.pipeline_mode<synchronous>, transform_indices = @transform_8, window_bounds = array<i64: 32, 4>}, {pipeline_mode = #tpu.pipeline_mode<synchronous>, transform_indices = @transform_9, window_bounds = array<i64: 4, 32>}, {transform_indices = @transform_10, window_bounds = array<i64: 1, 8, 32>}]} {
    %c0 = arith.constant 0 : index
    %c0_0 = arith.constant 0 : index
    %c0_1 = arith.constant 0 : index
    %0 = vector.load %arg1[%c0, %c0_0, %c0_1] : memref<1x1x32xf32, #tpu.memory_space<vmem>>, vector<1x1x32xf32>
    %1 = vector.shape_cast %0 : vector<1x1x32xf32> to vector<1x32xf32>
    %c0_2 = arith.constant 0 : index
    %c0_3 = arith.constant 0 : index
    %c0_4 = arith.constant 0 : index
    %2 = vector.load %arg2[%c0_2, %c0_3, %c0_4] : memref<1x8x32xf32, #tpu.memory_space<vmem>>, vector<1x8x32xf32>
    %c0_5 = arith.constant 0 : index
    %c0_6 = arith.constant 0 : index
    %c0_7 = arith.constant 0 : index
    %3 = vector.load %arg3[%c0_5, %c0_6, %c0_7] : memref<1x8x32xf32, #tpu.memory_space<vmem>>, vector<1x8x32xf32>
    %c0_8 = arith.constant 0 : index
    %c0_9 = arith.constant 0 : index
    %4 = vector.load %arg4[%c0_8, %c0_9] : memref<32x32xf32, #tpu.memory_space<vmem>>, vector<32x32xf32>
    %cst = arith.constant dense<0.000000e+00> : vector<1x32xf32>
    %5 = tpu.matmul %1, %4, %cst {dimension_numbers = #tpu.dot_dimension_numbers<[1], [0], [0], [1], [0, 0, 1, 1], [], []>} : vector<1x32xf32>, vector<32x32xf32>, vector<1x32xf32> -> vector<1x32xf32>
    %6 = vector.shape_cast %2 : vector<1x8x32xf32> to vector<8x32xf32>
    %c0_10 = arith.constant 0 : index
    %c0_11 = arith.constant 0 : index
    %7 = vector.load %arg5[%c0_10, %c0_11] : memref<32x32xf32, #tpu.memory_space<vmem>>, vector<32x32xf32>
    %cst_12 = arith.constant dense<0.000000e+00> : vector<8x32xf32>
    %8 = tpu.matmul %6, %7, %cst_12 {dimension_numbers = #tpu.dot_dimension_numbers<[1], [0], [0], [1], [0, 0, 1, 1], [], []>} : vector<8x32xf32>, vector<32x32xf32>, vector<8x32xf32> -> vector<8x32xf32>
    %9 = vector.shape_cast %8 : vector<8x32xf32> to vector<1x8x32xf32>
    %10 = vector.shape_cast %3 : vector<1x8x32xf32> to vector<8x32xf32>
    %c0_13 = arith.constant 0 : index
    %c0_14 = arith.constant 0 : index
    %11 = vector.load %arg6[%c0_13, %c0_14] : memref<32x32xf32, #tpu.memory_space<vmem>>, vector<32x32xf32>
    %cst_15 = arith.constant dense<0.000000e+00> : vector<8x32xf32>
    %12 = tpu.matmul %10, %11, %cst_15 {dimension_numbers = #tpu.dot_dimension_numbers<[1], [0], [0], [1], [0, 0, 1, 1], [], []>} : vector<8x32xf32>, vector<32x32xf32>, vector<8x32xf32> -> vector<8x32xf32>
    %13 = vector.shape_cast %12 : vector<8x32xf32> to vector<1x8x32xf32>
    %c0_16 = arith.constant 0 : index
    %c0_17 = arith.constant 0 : index
    %14 = vector.load %arg9[%c0_16, %c0_17] : memref<32x4xf32, #tpu.memory_space<vmem>>, vector<32x4xf32>
    %15 = vector.shape_cast %5 : vector<1x32xf32> to vector<1x32x1xf32>
    %16 = vector.shape_cast %14 : vector<32x4xf32> to vector<1x32x4xf32>
    %17 = vector.broadcast %15 : vector<1x32x1xf32> to vector<1x32x4xf32>
    %18 = arith.mulf %17, %16 : vector<1x32x4xf32>
    "tpu.trace_start"() <{level = 10 : i32, message = "nte,neh->nth"}> : () -> ()
    %cst_18 = arith.constant dense<0.000000e+00> : vector<1x8x4xf32>
    %19 = tpu.matmul %9, %18, %cst_18 {dimension_numbers = #tpu.dot_dimension_numbers<[2], [1], [1], [2], [0, 0, 0, 1, 1, 2], [0], [0]>} : vector<1x8x32xf32>, vector<1x32x4xf32>, vector<1x8x4xf32> -> vector<1x8x4xf32>
    "tpu.trace_stop"() : () -> ()
    %20 = tpu.transpose %19, [0, 2, 1] : vector<1x8x4xf32> -> vector<1x4x8xf32>
    %cst_19 = arith.constant dense<0xFF800000> : vector<1x4xf32>
    %21 = vector.multi_reduction <maximumf>, %20, %cst_19 [2] : vector<1x4x8xf32> to vector<1x4xf32>
    %22 = vector.shape_cast %21 : vector<1x4xf32> to vector<1x4x1xf32>
    %23 = vector.broadcast %22 : vector<1x4x1xf32> to vector<1x4x8xf32>
    %24 = arith.subf %20, %23 : vector<1x4x8xf32>
    %25 = math.exp %24 : vector<1x4x8xf32>
    %cst_20 = arith.constant dense<0.000000e+00> : vector<1x4xf32>
    %26 = vector.multi_reduction <add>, %25, %cst_20 [2] : vector<1x4x8xf32> to vector<1x4xf32>
    %27 = vector.shape_cast %26 : vector<1x4xf32> to vector<1x4x1xf32>
    %28 = tpu.reciprocal %27 : vector<1x4x1xf32> -> vector<1x4x1xf32>
    %29 = vector.broadcast %28 : vector<1x4x1xf32> to vector<1x4x8xf32>
    %30 = arith.mulf %25, %29 : vector<1x4x8xf32>
    "tpu.trace_start"() <{level = 10 : i32, message = "nht,nte->nhe"}> : () -> ()
    %cst_21 = arith.constant dense<0.000000e+00> : vector<1x4x32xf32>
    %31 = tpu.matmul %30, %13, %cst_21 {dimension_numbers = #tpu.dot_dimension_numbers<[2], [1], [1], [2], [0, 0, 0, 1, 1, 2], [0], [0]>} : vector<1x4x8xf32>, vector<1x8x32xf32>, vector<1x4x32xf32> -> vector<1x4x32xf32>
    "tpu.trace_stop"() : () -> ()
    %c0_22 = arith.constant 0 : index
    %c0_23 = arith.constant 0 : index
    %32 = vector.load %arg10[%c0_22, %c0_23] : memref<4x32xf32, #tpu.memory_space<vmem>>, vector<4x32xf32>
    %33 = vector.shape_cast %32 : vector<4x32xf32> to vector<1x4x32xf32>
    %34 = arith.mulf %31, %33 : vector<1x4x32xf32>
    %cst_24 = arith.constant dense<0.000000e+00> : vector<1x32xf32>
    %35 = vector.multi_reduction <add>, %34, %cst_24 [1] : vector<1x4x32xf32> to vector<1x32xf32>
    %c0_25 = arith.constant 0 : index
    %c0_26 = arith.constant 0 : index
    %36 = vector.load %arg7[%c0_25, %c0_26] : memref<32x32xf32, #tpu.memory_space<vmem>>, vector<32x32xf32>
    %cst_27 = arith.constant dense<0.000000e+00> : vector<1x32xf32>
    %37 = tpu.matmul %35, %36, %cst_27 {dimension_numbers = #tpu.dot_dimension_numbers<[1], [0], [0], [1], [0, 0, 1, 1], [], []>} : vector<1x32xf32>, vector<32x32xf32>, vector<1x32xf32> -> vector<1x32xf32>
    %c0_28 = arith.constant 0 : index
    %c0_29 = arith.constant 0 : index
    %38 = vector.load %arg8[%c0_28, %c0_29] : memref<1x32xf32, #tpu.memory_space<vmem>>, vector<1x32xf32>
    %39 = arith.addf %37, %38 : vector<1x32xf32>
    %40 = vector.shape_cast %39 : vector<1x32xf32> to vector<1x1x32xf32>
    %41 = vector.broadcast %40 : vector<1x1x32xf32> to vector<1x8x32xf32>
    %42 = arith.addf %41, %3 : vector<1x8x32xf32>
    %c0_30 = arith.constant 0 : index
    %c0_31 = arith.constant 0 : index
    %c0_32 = arith.constant 0 : index
    %43 = vector.load %arg11[%c0_30, %c0_31, %c0_32] : memref<1x8x32xf32, #tpu.memory_space<vmem>>, vector<1x8x32xf32>
    tpu.vector_store %arg11[%c0_30, %c0_31, %c0_32], %42 {strides = array<i32>} : memref<1x8x32xf32, #tpu.memory_space<vmem>>, vector<1x8x32xf32>,
    return
  }
  func.func @transform_0(%arg0: i32) -> (i32, i32, i32) {
    %c0_i32 = arith.constant 0 : i32
    %c0_i32_0 = arith.constant 0 : i32
    %c0_i32_1 = arith.constant 0 : i32
    return %arg0, %c0_i32, %c0_i32_0 : i32, i32, i32
  }
  func.func @transform_1(%arg0: i32) -> (i32, i32, i32) {
    %c0_i32 = arith.constant 0 : i32
    %c0_i32_0 = arith.constant 0 : i32
    %c0_i32_1 = arith.constant 0 : i32
    return %arg0, %c0_i32, %c0_i32_0 : i32, i32, i32
  }
  func.func @transform_2(%arg0: i32) -> (i32, i32, i32) {
    %c0_i32 = arith.constant 0 : i32
    %c0_i32_0 = arith.constant 0 : i32
    %c0_i32_1 = arith.constant 0 : i32
    return %arg0, %c0_i32, %c0_i32_0 : i32, i32, i32
  }
  func.func @transform_3(%arg0: i32) -> (i32, i32) {
    %c0_i32 = arith.constant 0 : i32
    %c0_i32_0 = arith.constant 0 : i32
    %c0_i32_1 = arith.constant 0 : i32
    return %c0_i32, %c0_i32_0 : i32, i32
  }
  func.func @transform_4(%arg0: i32) -> (i32, i32) {
    %c0_i32 = arith.constant 0 : i32
    %c0_i32_0 = arith.constant 0 : i32
    %c0_i32_1 = arith.constant 0 : i32
    return %c0_i32, %c0_i32_0 : i32, i32
  }
  func.func @transform_5(%arg0: i32) -> (i32, i32) {
    %c0_i32 = arith.constant 0 : i32
    %c0_i32_0 = arith.constant 0 : i32
    %c0_i32_1 = arith.constant 0 : i32
    return %c0_i32, %c0_i32_0 : i32, i32
  }
  func.func @transform_6(%arg0: i32) -> (i32, i32) {
    %c0_i32 = arith.constant 0 : i32
    %c0_i32_0 = arith.constant 0 : i32
    %c0_i32_1 = arith.constant 0 : i32
    return %c0_i32, %c0_i32_0 : i32, i32
  }
  func.func @transform_7(%arg0: i32) -> (i32, i32) {
    %c0_i32 = arith.constant 0 : i32
    %c0_i32_0 = arith.constant 0 : i32
    %c0_i32_1 = arith.constant 0 : i32
    return %c0_i32, %c0_i32_0 : i32, i32
  }
  func.func @transform_8(%arg0: i32) -> (i32, i32) {
    %c0_i32 = arith.constant 0 : i32
    %c0_i32_0 = arith.constant 0 : i32
    %c0_i32_1 = arith.constant 0 : i32
    return %c0_i32, %c0_i32_0 : i32, i32
  }
  func.func @transform_9(%arg0: i32) -> (i32, i32) {
    %c0_i32 = arith.constant 0 : i32
    %c0_i32_0 = arith.constant 0 : i32
    %c0_i32_1 = arith.constant 0 : i32
    return %c0_i32, %c0_i32_0 : i32, i32
  }
  func.func @transform_10(%arg0: i32) -> (i32, i32, i32) {
    %c0_i32 = arith.constant 0 : i32
    %c0_i32_0 = arith.constant 0 : i32
    %c0_i32_1 = arith.constant 0 : i32
    return %arg0, %c0_i32, %c0_i32_0 : i32, i32, i32
  }
}

</mosaic_0001>

<llo_original>
// kernel: tpu_custom_call.1
$region0: #{tpu_custom_call.1}
  #allocation0 [shape = 'u32[]', space=smem, size = 0x4, offset = 0x4, fixed_abs, tag = 'smem constant byte address 0x4 - core index']
  #allocation1 [shape = 'u32[144,128]{1,0:T(1,128)}', space=vmem, size = 0x12000, scoped, tag = 'internal scratch']
  %s0 = inlined_call_operand.vmem [shape: f32[2,1,32], index: 0, kind: input, shape index: {}]
  %s1 = inlined_call_operand.hbm [shape: f32[2,8,32], index: 1, kind: input, shape index: {}]
  %s2 = inlined_call_operand.hbm [shape: f32[2,8,32], index: 2, kind: input, shape index: {}]
  %s3 = inlined_call_operand.vmem [shape: f32[32,32], index: 3, kind: input, shape index: {}]
  %s4 = inlined_call_operand.hbm [shape: f32[32,32], index: 4, kind: input, shape index: {}]
  %s5 = inlined_call_operand.hbm [shape: f32[32,32], index: 5, kind: input, shape index: {}]
  %s6 = inlined_call_operand.hbm [shape: f32[32,32], index: 6, kind: input, shape index: {}]
  %s7 = inlined_call_operand.vmem [shape: f32[1,32], index: 7, kind: input, shape index: {}]
  %s8 = inlined_call_operand.vmem [shape: f32[32,4], index: 8, kind: input, shape index: {}]
  %s9 = inlined_call_operand.vmem [shape: f32[4,32], index: 9, kind: input, shape index: {}]
  %s10 = inlined_call_operand.hbm [shape: f32[2,8,32], index: 10, kind: output, shape index: {}]
  %s11 = sld [smem:[#allocation0]]
  $region93: #{tpu_custom_call.1} parent=0
    _
  %s13 = ssub.s32 1, %s11
  %s14 = scalar_select 0, %s13, %s11
  $region1: #{tpu_custom_call.1} parent=0
    #allocation2 [shape = 'u8[8192]{0}', space=vmem, size = 0x2000, scoped, tag = 'input window, operand 1']
    #allocation3 [shape = 's32[2]{0}', space=sflag, size = 0x8, scoped, tag = 'scoped memory for tpu_custom_call.1']
    #allocation4 [shape = 's32[2]{0}', space=sflag, size = 0x8, scoped, tag = 'scoped memory for tpu_custom_call.1']
    #allocation5 [shape = 'u8[8192]{0}', space=vmem, size = 0x2000, scoped, tag = 'input window, operand 2']
    #allocation6 [shape = 's32[2]{0}', space=sflag, size = 0x8, scoped, tag = 'scoped memory for tpu_custom_call.1']
    #allocation7 [shape = 'u8[16384]{0}', space=vmem, size = 0x4000, scoped, tag = 'input window, operand 4, single buffered']
    #allocation8 [shape = 'u8[16384]{0}', space=vmem, size = 0x4000, scoped, tag = 'input window, operand 5, single buffered']
    #allocation9 [shape = 's32[1]{0}', space=sflag, size = 0x4, scoped, tag = 'scoped memory for tpu_custom_call.1']
    #allocation10 [shape = 'u8[16384]{0}', space=vmem, size = 0x4000, scoped, tag = 'input window, operand 6, single buffered']
    #allocation11 [shape = 'u8[8192]{0}', space=vmem, size = 0x2000, scoped, tag = 'output window, operand 0']
    %15 = vsyncpa [#allocation3], 0
    %s16 = scalar_lea.sflag [#allocation3], 1
    %17 = vsyncpa %s16, 0
    %18 = vsyncpa [#allocation6], 0
    %s19 = scalar_lea.sflag [#allocation6], 1
    %20 = vsyncpa %s19, 0
    %21 = vsyncpa [#allocation9], 0
    %22 = vsyncpa [#allocation4], 0
    %s23 = scalar_lea.sflag [#allocation4], 1
    %24 = vsyncpa %s23, 0
    loop: start=0, step=1, limit=4
    $region2: #{tpu_custom_call.1} parent=1 // loop_pre_header
      _
    $region3: #{tpu_custom_call.1} parent=1 // loop_header
      %s26 = sphi 0, %s30
      %p27 = scmp.ge.s32.totalorder %s26, 4
      %s36 = sphi 0, %s38
      %s39 = sphi 0, %s36
      %s40 = sphi 0, %s39
      %s56 = sphi 0, %s40
      %s62 = sphi 0, %s64
      %s65 = sphi 0, %s62
      %s66 = sphi 0, %s65
      %s82 = sphi 0, %s66
      %s88 = sphi 0, %s90
      %s91 = sphi 0, %s88
      %s92 = sphi 0, %s91
      %s108 = sphi 0, %s92
      %s112 = sphi 0, %s112
      %s114 = sphi 0, %s112
      %s115 = sphi 0, %s114
      %s129 = sphi 0, %s115
      %s133 = sphi 0, %s133
      %s135 = sphi 0, %s133
      %s136 = sphi 0, %s135
      %s150 = sphi 0, %s136
      %s154 = sphi 0, %s154
      %s156 = sphi 0, %s154
      %s157 = sphi 0, %s156
      %s171 = sphi 0, %s157
      %s175 = sphi 0, %s175
      %s177 = sphi 0, %s175
      %s178 = sphi 0, %s177
      %s192 = sphi 0, %s178
      %s196 = sphi 0, %s196
      %s198 = sphi 0, %s196
      %s199 = sphi 0, %s198
      %s213 = sphi 0, %s199
      %s217 = sphi 0, %s217
      %s219 = sphi 0, %s217
      %s220 = sphi 0, %s219
      %s234 = sphi 0, %s220
      %s238 = sphi 0, %s238
      %s240 = sphi 0, %s238
      %s241 = sphi 0, %s240
      %s255 = sphi 0, %s241
      %s261 = sphi 0, %s263
      %s264 = sphi 0, %s261
      %s265 = sphi 0, %s264
      %s281 = sphi 0, %s265
    $region4: #{tpu_custom_call.1} parent=1 // loop_header_branch
      %29 = sbr.rel (%p27) target = $region8
    $region5: #{tpu_custom_call.1} parent=1 // loop_body
      %s31 = ssub.s32 %s26, 1
      %s32 = ssub.s32 %s26, 2
      %s33 = sadd.s32 %s26, 1
      %s34 = ssub.s32 %s26, %s33
      %p35 = scmp.eq.s32.totalorder %s34, 0
      %s37 = sadd.s32 %s36, 1
      %s38 = scalar_select %p35, %s36, %s37
      %p41 = pneg %p35
      %p42 = scmp.eq.s32.totalorder %s26, 1
      %p43 = por %p41, %p42
      %p44 = scmp.ne.s32.totalorder %s36, %s39
      %p45 = scmp.eq.s32.totalorder %s26, 0
      %p46 = por %p44, %p45
      %p47 = scmp.ne.s32.totalorder %s36, %s39
      %p48 = scmp.eq.s32.totalorder %s31, 1
      %p49 = por %p47, %p48
      %p50 = scmp.ne.s32.totalorder %s39, %s40
      %p51 = scmp.eq.s32.totalorder %s31, 0
      %p52 = por %p50, %p51
      %p53 = scmp.ne.s32.totalorder %s39, %s40
      %p54 = scmp.eq.s32.totalorder %s32, 1
      %p55 = por %p53, %p54
      %p57 = scmp.ne.s32.totalorder %s40, %s56
      %p58 = scmp.eq.s32.totalorder %s32, 0
      %p59 = por %p57, %p58
      %s60 = ssub.s32 %s26, %s33
      %p61 = scmp.eq.s32.totalorder %s60, 0
      %s63 = sadd.s32 %s62, 1
      %s64 = scalar_select %p61, %s62, %s63
      %p67 = pneg %p61
      %p68 = scmp.eq.s32.totalorder %s26, 1
      %p69 = por %p67, %p68
      %p70 = scmp.ne.s32.totalorder %s62, %s65
      %p71 = scmp.eq.s32.totalorder %s26, 0
      %p72 = por %p70, %p71
      %p73 = scmp.ne.s32.totalorder %s62, %s65
      %p74 = scmp.eq.s32.totalorder %s31, 1
      %p75 = por %p73, %p74
      %p76 = scmp.ne.s32.totalorder %s65, %s66
      %p77 = scmp.eq.s32.totalorder %s31, 0
      %p78 = por %p76, %p77
      %p79 = scmp.ne.s32.totalorder %s65, %s66
      %p80 = scmp.eq.s32.totalorder %s32, 1
      %p81 = por %p79, %p80
      %p83 = scmp.ne.s32.totalorder %s66, %s82
      %p84 = scmp.eq.s32.totalorder %s32, 0
      %p85 = por %p83, %p84
      %s86 = ssub.s32 %s26, %s33
      %p87 = scmp.eq.s32.totalorder %s86, 0
      %s89 = sadd.s32 %s88, 1
      %s90 = scalar_select %p87, %s88, %s89
      %p93 = pneg %p87
      %p94 = scmp.eq.s32.totalorder %s26, 1
      %p95 = por %p93, %p94
      %p96 = scmp.ne.s32.totalorder %s88, %s91
      %p97 = scmp.eq.s32.totalorder %s26, 0
      %p98 = por %p96, %p97
      %p99 = scmp.ne.s32.totalorder %s88, %s91
      %p100 = scmp.eq.s32.totalorder %s31, 1
      %p101 = por %p99, %p100
      %p102 = scmp.ne.s32.totalorder %s91, %s92
      %p103 = scmp.eq.s32.totalorder %s31, 0
      %p104 = por %p102, %p103
      %p105 = scmp.ne.s32.totalorder %s91, %s92
      %p106 = scmp.eq.s32.totalorder %s32, 1
      %p107 = por %p105, %p106
      %p109 = scmp.ne.s32.totalorder %s92, %s108
      %p110 = scmp.eq.s32.totalorder %s32, 0
      %p111 = por %p109, %p110
      %s113 = sadd.s32 %s112, 1
      %p116 = scmp.eq.s32.totalorder %s26, 1
      %p117 = scmp.ne.s32.totalorder %s112, %s114
      %p118 = scmp.eq.s32.totalorder %s26, 0
      %p119 = por %p117, %p118
      %p120 = scmp.ne.s32.totalorder %s112, %s114
      %p121 = scmp.eq.s32.totalorder %s31, 1
      %p122 = por %p120, %p121
      %p123 = scmp.ne.s32.totalorder %s114, %s115
      %p124 = scmp.eq.s32.totalorder %s31, 0
      %p125 = por %p123, %p124
      %p126 = scmp.ne.s32.totalorder %s114, %s115
      %p127 = scmp.eq.s32.totalorder %s32, 1
      %p128 = por %p126, %p127
      %p130 = scmp.ne.s32.totalorder %s115, %s129
      %p131 = scmp.eq.s32.totalorder %s32, 0
      %p132 = por %p130, %p131
      %s134 = sadd.s32 %s133, 1
      %p137 = scmp.eq.s32.totalorder %s26, 1
      %p138 = scmp.ne.s32.totalorder %s133, %s135
      %p139 = scmp.eq.s32.totalorder %s26, 0
      %p140 = por %p138, %p139
      %p141 = scmp.ne.s32.totalorder %s133, %s135
      %p142 = scmp.eq.s32.totalorder %s31, 1
      %p143 = por %p141, %p142
      %p144 = scmp.ne.s32.totalorder %s135, %s136
      %p145 = scmp.eq.s32.totalorder %s31, 0
      %p146 = por %p144, %p145
      %p147 = scmp.ne.s32.totalorder %s135, %s136
      %p148 = scmp.eq.s32.totalorder %s32, 1
      %p149 = por %p147, %p148
      %p151 = scmp.ne.s32.totalorder %s136, %s150
      %p152 = scmp.eq.s32.totalorder %s32, 0
      %p153 = por %p151, %p152
      %s155 = sadd.s32 %s154, 1
      %p158 = scmp.eq.s32.totalorder %s26, 1
      %p159 = scmp.ne.s32.totalorder %s154, %s156
      %p160 = scmp.eq.s32.totalorder %s26, 0
      %p161 = por %p159, %p160
      %p162 = scmp.ne.s32.totalorder %s154, %s156
      %p163 = scmp.eq.s32.totalorder %s31, 1
      %p164 = por %p162, %p163
      %p165 = scmp.ne.s32.totalorder %s156, %s157
      %p166 = scmp.eq.s32.totalorder %s31, 0
      %p167 = por %p165, %p166
      %p168 = scmp.ne.s32.totalorder %s156, %s157
      %p169 = scmp.eq.s32.totalorder %s32, 1
      %p170 = por %p168, %p169
      %p172 = scmp.ne.s32.totalorder %s157, %s171
      %p173 = scmp.eq.s32.totalorder %s32, 0
      %p174 = por %p172, %p173
      %s176 = sadd.s32 %s175, 1
      %p179 = scmp.eq.s32.totalorder %s26, 1
      %p180 = scmp.ne.s32.totalorder %s175, %s177
      %p181 = scmp.eq.s32.totalorder %s26, 0
      %p182 = por %p180, %p181
      %p183 = scmp.ne.s32.totalorder %s175, %s177
      %p184 = scmp.eq.s32.totalorder %s31, 1
      %p185 = por %p183, %p184
      %p186 = scmp.ne.s32.totalorder %s177, %s178
      %p187 = scmp.eq.s32.totalorder %s31, 0
      %p188 = por %p186, %p187
      %p189 = scmp.ne.s32.totalorder %s177, %s178
      %p190 = scmp.eq.s32.totalorder %s32, 1
      %p191 = por %p189, %p190
      %p193 = scmp.ne.s32.totalorder %s178, %s192
      %p194 = scmp.eq.s32.totalorder %s32, 0
      %p195 = por %p193, %p194
      %s197 = sadd.s32 %s196, 1
      %p200 = scmp.eq.s32.totalorder %s26, 1
      %p201 = scmp.ne.s32.totalorder %s196, %s198
      %p202 = scmp.eq.s32.totalorder %s26, 0
      %p203 = por %p201, %p202
      %p204 = scmp.ne.s32.totalorder %s196, %s198
      %p205 = scmp.eq.s32.totalorder %s31, 1
      %p206 = por %p204, %p205
      %p207 = scmp.ne.s32.totalorder %s198, %s199
      %p208 = scmp.eq.s32.totalorder %s31, 0
      %p209 = por %p207, %p208
      %p210 = scmp.ne.s32.totalorder %s198, %s199
      %p211 = scmp.eq.s32.totalorder %s32, 1
      %p212 = por %p210, %p211
      %p214 = scmp.ne.s32.totalorder %s199, %s213
      %p215 = scmp.eq.s32.totalorder %s32, 0
      %p216 = por %p214, %p215
      %s218 = sadd.s32 %s217, 1
      %p221 = scmp.eq.s32.totalorder %s26, 1
      %p222 = scmp.ne.s32.totalorder %s217, %s219
      %p223 = scmp.eq.s32.totalorder %s26, 0
      %p224 = por %p222, %p223
      %p225 = scmp.ne.s32.totalorder %s217, %s219
      %p226 = scmp.eq.s32.totalorder %s31, 1
      %p227 = por %p225, %p226
      %p228 = scmp.ne.s32.totalorder %s219, %s220
      %p229 = scmp.eq.s32.totalorder %s31, 0
      %p230 = por %p228, %p229
      %p231 = scmp.ne.s32.totalorder %s219, %s220
      %p232 = scmp.eq.s32.totalorder %s32, 1
      %p233 = por %p231, %p232
      %p235 = scmp.ne.s32.totalorder %s220, %s234
      %p236 = scmp.eq.s32.totalorder %s32, 0
      %p237 = por %p235, %p236
      %s239 = sadd.s32 %s238, 1
      %p242 = scmp.eq.s32.totalorder %s26, 1
      %p243 = scmp.ne.s32.totalorder %s238, %s240
      %p244 = scmp.eq.s32.totalorder %s26, 0
      %p245 = por %p243, %p244
      %p246 = scmp.ne.s32.totalorder %s238, %s240
      %p247 = scmp.eq.s32.totalorder %s31, 1
      %p248 = por %p246, %p247
      %p249 = scmp.ne.s32.totalorder %s240, %s241
      %p250 = scmp.eq.s32.totalorder %s31, 0
      %p251 = por %p249, %p250
      %p252 = scmp.ne.s32.totalorder %s240, %s241
      %p253 = scmp.eq.s32.totalorder %s32, 1
      %p254 = por %p252, %p253
      %p256 = scmp.ne.s32.totalorder %s241, %s255
      %p257 = scmp.eq.s32.totalorder %s32, 0
      %p258 = por %p256, %p257
      %s259 = ssub.s32 %s26, %s33
      %p260 = scmp.eq.s32.totalorder %s259, 0
      %s262 = sadd.s32 %s261, 1
      %s263 = scalar_select %p260, %s261, %s262
      %p266 = pneg %p260
      %p267 = scmp.eq.s32.totalorder %s26, 1
      %p268 = por %p266, %p267
      %p269 = scmp.ne.s32.totalorder %s261, %s264
      %p270 = scmp.eq.s32.totalorder %s26, 0
      %p271 = por %p269, %p270
      %p272 = scmp.ne.s32.totalorder %s261, %s264
      %p273 = scmp.eq.s32.totalorder %s31, 1
      %p274 = por %p272, %p273
      %p275 = scmp.ne.s32.totalorder %s264, %s265
      %p276 = scmp.eq.s32.totalorder %s31, 0
      %p277 = por %p275, %p276
      %p278 = scmp.ne.s32.totalorder %s264, %s265
      %p279 = scmp.eq.s32.totalorder %s32, 1
      %p280 = por %p278, %p279
      %p282 = scmp.ne.s32.totalorder %s265, %s281
      %p283 = scmp.eq.s32.totalorder %s32, 0
      %p284 = por %p282, %p283
      %p285 = scmp.le.s32.totalorder 1, %s26
      %p286 = scmp.lt.s32.totalorder %s26, 3
      %p287 = pnand %p285, %p286
      %p288 = pneg %p287
      // Predicated region
      $region9: #{tpu_custom_call.1} parent=5 // pred_check
        _
      $region10: #{tpu_custom_call.1} parent=5 // pred_check_branch
        %290 = sbr.rel (%p287) target = $region12
      $region11: #{tpu_custom_call.1} parent=5 // pred_region
        %s291 = ssub.s32 %s26, 1
        // Predicated region
        $region13: #{tpu_custom_call.1} parent=11 // pred_check
          %p292 = pneg %p125
        $region14: #{tpu_custom_call.1} parent=11 // pred_check_branch
          %294 = sbr.rel (%p292) target = $region16
        $region15: #{tpu_custom_call.1} parent=11 // pred_region
          _
        $region16: #{tpu_custom_call.1} parent=11 // pred_fallthru
          _
        // Predicated region
        $region17: #{tpu_custom_call.1} parent=11 // pred_check
          %p295 = pneg %p146
        $region18: #{tpu_custom_call.1} parent=11 // pred_check_branch
          %297 = sbr.rel (%p295) target = $region20
        $region19: #{tpu_custom_call.1} parent=11 // pred_region
          %s299 = ssub.s32 512, 512
          %300 = vsyncadd [#allocation6], %s299
          %s301 = sshll.u32 [#allocation7], 4
          %s302 = int_to_ptr.vmem [resolvable:$true] %s301
          %307 = dma.hbm_to_vmem [thread:$0]  %s4, 512, %s302, [#allocation6], 128, 128, 8
        $region20: #{tpu_custom_call.1} parent=11 // pred_fallthru
          _
        // Predicated region
        $region21: #{tpu_custom_call.1} parent=11 // pred_check
          %p308 = pneg %p167
        $region22: #{tpu_custom_call.1} parent=11 // pred_check_branch
          %310 = sbr.rel (%p308) target = $region24
        $region23: #{tpu_custom_call.1} parent=11 // pred_region
          %s312 = ssub.s32 512, 512
          %313 = vsyncadd [#allocation9], %s312
          %s314 = sshll.u32 [#allocation8], 4
          %s315 = int_to_ptr.vmem [resolvable:$true] %s314
          %320 = dma.hbm_to_vmem [thread:$0]  %s5, 512, %s315, [#allocation9], 128, 128, 8
        $region24: #{tpu_custom_call.1} parent=11 // pred_fallthru
          _
        // Predicated region
        $region25: #{tpu_custom_call.1} parent=11 // pred_check
          %p321 = pneg %p188
        $region26: #{tpu_custom_call.1} parent=11 // pred_check_branch
          %323 = sbr.rel (%p321) target = $region28
        $region27: #{tpu_custom_call.1} parent=11 // pred_region
          %s325 = ssub.s32 512, 512
          %326 = vsyncadd [#allocation9], %s325
          %s327 = sshll.u32 [#allocation10], 4
          %s328 = int_to_ptr.vmem [resolvable:$true] %s327
          %333 = dma.hbm_to_vmem [thread:$0]  %s6, 512, %s328, [#allocation9], 128, 128, 8
        $region28: #{tpu_custom_call.1} parent=11 // pred_fallthru
          _
        // Predicated region
        $region29: #{tpu_custom_call.1} parent=11 // pred_check
          %p334 = pneg %p209
        $region30: #{tpu_custom_call.1} parent=11 // pred_check_branch
          %336 = sbr.rel (%p334) target = $region32
        $region31: #{tpu_custom_call.1} parent=11 // pred_region
          _
        $region32: #{tpu_custom_call.1} parent=11 // pred_fallthru
          _
        // Predicated region
        $region33: #{tpu_custom_call.1} parent=11 // pred_check
          %p337 = pneg %p230
        $region34: #{tpu_custom_call.1} parent=11 // pred_check_branch
          %339 = sbr.rel (%p337) target = $region36
        $region35: #{tpu_custom_call.1} parent=11 // pred_region
          _
        $region36: #{tpu_custom_call.1} parent=11 // pred_fallthru
          _
        // Predicated region
        $region37: #{tpu_custom_call.1} parent=11 // pred_check
          %p340 = pneg %p251
        $region38: #{tpu_custom_call.1} parent=11 // pred_check_branch
          %342 = sbr.rel (%p340) target = $region40
        $region39: #{tpu_custom_call.1} parent=11 // pred_region
          _
        $region40: #{tpu_custom_call.1} parent=11 // pred_fallthru
          _
      $region12: #{tpu_custom_call.1} parent=5 // pred_fallthru
        _
      %p343 = scmp.lt.s32.totalorder %s26, 2
      // Predicated region
      $region41: #{tpu_custom_call.1} parent=5 // pred_check
        %p344 = pneg %p343
      $region42: #{tpu_custom_call.1} parent=5 // pred_check_branch
        %346 = sbr.rel (%p344) target = $region44
      $region43: #{tpu_custom_call.1} parent=5 // pred_region
        // Predicated region
        $region45: #{tpu_custom_call.1} parent=43 // pred_check
          %p347 = pneg %p46
        $region46: #{tpu_custom_call.1} parent=43 // pred_check_branch
          %349 = sbr.rel (%p347) target = $region48
        $region47: #{tpu_custom_call.1} parent=43 // pred_region
          %p350 = scmp.lt.s32.totalorder %s26, 1
          %s351 = scalar_select %p350, %s26, 1
          %s352 = scalar_lea.vmem %s0, %s351
        $region48: #{tpu_custom_call.1} parent=43 // pred_fallthru
          _
        // Predicated region
        $region49: #{tpu_custom_call.1} parent=43 // pred_check
          %p353 = pneg %p72
        $region50: #{tpu_custom_call.1} parent=43 // pred_check_branch
          %355 = sbr.rel (%p353) target = $region52
        $region51: #{tpu_custom_call.1} parent=43 // pred_region
          %s356 = sand.u32 %s62, 1
          %s357 = scalar_lea.sflag [#allocation3], %s356
          %s358 = sand.u32 %s62, 1
          %s359 = smul.addr %s358, 8
          %s360 = scalar_lea.vmem [#allocation2], %s359
          %s362 = ssub.s32 128, 128
          %363 = vsyncadd %s357, %s362
          %s364 = smul.addr %s26, 128
          %s365 = scalar_lea.hbm %s1, %s364
          %s367 = sshll.u32 %s360, 4
          %s368 = int_to_ptr.vmem [resolvable:$true] %s367
          %370 = dma.hbm_to_vmem [thread:$0]  %s365, 128, %s368, %s357
        $region52: #{tpu_custom_call.1} parent=43 // pred_fallthru
          _
        // Predicated region
        $region53: #{tpu_custom_call.1} parent=43 // pred_check
          %p371 = pneg %p98
        $region54: #{tpu_custom_call.1} parent=43 // pred_check_branch
          %373 = sbr.rel (%p371) target = $region56
        $region55: #{tpu_custom_call.1} parent=43 // pred_region
          %s374 = sand.u32 %s26, 1
          %s375 = scalar_lea.sflag [#allocation6], %s374
          %s376 = sand.u32 %s88, 1
          %s377 = smul.addr %s376, 8
          %s378 = scalar_lea.vmem [#allocation5], %s377
          %s380 = ssub.s32 128, 128
          %381 = vsyncadd %s375, %s380
          %s382 = smul.addr %s26, 128
          %s383 = scalar_lea.hbm %s2, %s382
          %s385 = sshll.u32 %s378, 4
          %s386 = int_to_ptr.vmem [resolvable:$true] %s385
          %388 = dma.hbm_to_vmem [thread:$0]  %s383, 128, %s386, %s375
        $region56: #{tpu_custom_call.1} parent=43 // pred_fallthru
          _
      $region44: #{tpu_custom_call.1} parent=5 // pred_fallthru
        _
      %p389 = scmp.le.s32.totalorder 1, %s26
      %p390 = scmp.lt.s32.totalorder %s26, 3
      %p391 = pnand %p389, %p390
      %p392 = pneg %p391
      // Predicated region
      $region57: #{tpu_custom_call.1} parent=5 // pred_check
        _
      $region58: #{tpu_custom_call.1} parent=5 // pred_check_branch
        %394 = sbr.rel (%p391) target = $region60
      $region59: #{tpu_custom_call.1} parent=5 // pred_region
        %s395 = ssub.s32 %s26, 1
        %s396 = sand.u32 %s65, 1
        %s397 = scalar_lea.sflag [#allocation3], %s396
        %s398 = sand.u32 %s65, 1
        %s399 = smul.addr %s398, 8
        %s400 = scalar_lea.vmem [#allocation2], %s399
        // Predicated region
        $region61: #{tpu_custom_call.1} parent=59 // pred_check
          %p401 = pneg %p78
        $region62: #{tpu_custom_call.1} parent=59 // pred_check_branch
          %403 = sbr.rel (%p401) target = $region64
        $region63: #{tpu_custom_call.1} parent=59 // pred_region
          %404 = dma.done %s397, 128
        $region64: #{tpu_custom_call.1} parent=59 // pred_fallthru
          _
        %s405 = sand.u32 %s31, 1
        %s406 = scalar_lea.sflag [#allocation6], %s405
        %s407 = sand.u32 %s91, 1
        %s408 = smul.addr %s407, 8
        %s409 = scalar_lea.vmem [#allocation5], %s408
        // Predicated region
        $region65: #{tpu_custom_call.1} parent=59 // pred_check
          %p410 = pneg %p104
        $region66: #{tpu_custom_call.1} parent=59 // pred_check_branch
          %412 = sbr.rel (%p410) target = $region68
        $region67: #{tpu_custom_call.1} parent=59 // pred_region
          %413 = dma.done %s406, 128
        $region68: #{tpu_custom_call.1} parent=59 // pred_fallthru
          _
        // Predicated region
        $region69: #{tpu_custom_call.1} parent=59 // pred_check
          %p414 = pneg %p146
        $region70: #{tpu_custom_call.1} parent=59 // pred_check_branch
          %416 = sbr.rel (%p414) target = $region72
        $region71: #{tpu_custom_call.1} parent=59 // pred_region
          %417 = dma.done [#allocation6], 512
        $region72: #{tpu_custom_call.1} parent=59 // pred_fallthru
          _
        // Predicated region
        $region73: #{tpu_custom_call.1} parent=59 // pred_check
          %p418 = pneg %p167
        $region74: #{tpu_custom_call.1} parent=59 // pred_check_branch
          %420 = sbr.rel (%p418) target = $region76
        $region75: #{tpu_custom_call.1} parent=59 // pred_region
          %421 = dma.done [#allocation9], 512
        $region76: #{tpu_custom_call.1} parent=59 // pred_fallthru
          _
        // Predicated region
        $region77: #{tpu_custom_call.1} parent=59 // pred_check
          %p422 = pneg %p188
        $region78: #{tpu_custom_call.1} parent=59 // pred_check_branch
          %424 = sbr.rel (%p422) target = $region80
        $region79: #{tpu_custom_call.1} parent=59 // pred_region
          %425 = dma.done [#allocation9], 512
        $region80: #{tpu_custom_call.1} parent=59 // pred_fallthru
          _
        %p426 = scmp.lt.s32.totalorder %s31, 1
        %s427 = scalar_select %p426, %s31, 1
        %s428 = scalar_lea.vmem %s0, %s427
        %p429 = pneg %p52
        %p430 = pneg %p49
        %s431 = sand.u32 %s65, 1
        %s432 = scalar_lea.sflag [#allocation3], %s431
        %s433 = sand.u32 %s65, 1
        %s434 = smul.addr %s433, 8
        %s435 = scalar_lea.vmem [#allocation2], %s434
        %p436 = pneg %p78
        %p437 = pneg %p75
        %s438 = sand.u32 %s31, 1
        %s439 = scalar_lea.sflag [#allocation6], %s438
        %s440 = sand.u32 %s91, 1
        %s441 = smul.addr %s440, 8
        %s442 = scalar_lea.vmem [#allocation5], %s441
        %p443 = pneg %p104
        %p444 = pneg %p101
        %p445 = pneg %p125
        %p446 = pneg %p122
        %p447 = pneg %p146
        %p448 = pneg %p143
        %p449 = pneg %p167
        %p450 = pneg %p164
        %p451 = pneg %p188
        %p452 = pneg %p185
        %p453 = pneg %p209
        %p454 = pneg %p206
        %p455 = pneg %p230
        %p456 = pneg %p227
        %p457 = pneg %p251
        %p458 = pneg %p248
        %p459 = pneg %p277
        %p460 = pneg %p274
        %s461 = sand.u32 %s264, 1
        %s462 = scalar_lea.sflag [#allocation4], %s461
        %s463 = sand.u32 %s264, 1
        %s464 = smul.addr %s463, 8
        %s465 = scalar_lea.vmem [#allocation11], %s464
        %p466 = scmp.lt.s32.totalorder %s31, 1
        %s467 = scalar_select %p466, %s31, 1
        %s468 = scalar_lea.vmem %s0, %s467
        %v469 = vld [vmem:[%s468] sm:$0x1]
        %v470 = vld [vmem:[%s400] sm:$0xff]
        %v471 = vld [vmem:[%s409] sm:$0xff]
        %v472 = vld [vmem:[%s3] sm:$0xff]
        %v473 = vld [vmem:[%s3 + $0x8] sm:$0xff]
        %v474 = vld [vmem:[%s3 + $0x10] sm:$0xff]
        %v475 = vld [vmem:[%s3 + $0x18] sm:$0xff]
        %vm476 = vcmask 261120
        %v478 = vsel %vm476, %v469, 0
        %480 = vmatprep.subr.mxu0 0.0
        %481 = vmatpush1.msra.mxu0 0.0
        %482 = vmatprep.subr.mxu0 0.0
        %483 = vmatpush1.msra.mxu0 0.0
        %484 = vmatprep.subr.mxu0 0.0
        %485 = vmatpush1.msra.mxu0 0.0
        %486 = vmatprep.subr.mxu0 0.0
        %487 = vmatpush1.msra.mxu0 0.0
        %488 = vmatprep.subr.mxu0 0.0
        %489 = vmatpush1.msra.mxu0 0.0
        %490 = vmatprep.subr.mxu0 0.0
        %491 = vmatpush1.msra.mxu0 0.0
        %492 = vmatprep.subr.mxu0 0.0
        %493 = vmatpush1.msra.mxu0 0.0
        %494 = vmatprep.subr.mxu0 0.0
        %495 = vmatpush1.msra.mxu0 0.0
        %496 = vmatprep.subr.mxu0 0.0
        %497 = vmatpush1.msra.mxu0 0.0
        %498 = vmatprep.subr.mxu0 0.0
        %499 = vmatpush1.msra.mxu0 0.0
        %500 = vmatprep.subr.mxu0 0.0
        %501 = vmatpush1.msra.mxu0 0.0
        %502 = vmatprep.subr.mxu0 0.0
        %503 = vmatpush1.msra.mxu0 0.0
        %504 = vmatprep.subr.mxu0 0.0
        %505 = vmatpush1.msra.mxu0 %v475
        %506 = vmatprep.subr.mxu0 0.0
        %507 = vmatpush1.msra.mxu0 %v474
        %508 = vmatprep.subr.mxu0 0.0
        %509 = vmatpush1.msra.mxu0 %v473
        %510 = vmatprep.subr.mxu0 0.0
        %511 = vmatpush1.msra.mxu0 %v472
        %512 = vmatprep.subr.mxu0 0.0
        %513 = vmatpush2.msra.mxu0 0.0
        %514 = vmatprep.subr.mxu0 0.0
        %515 = vmatpush2.msra.mxu0 0.0
        %516 = vmatprep.subr.mxu0 0.0
        %517 = vmatpush2.msra.mxu0 0.0
        %518 = vmatprep.subr.mxu0 0.0
        %519 = vmatpush2.msra.mxu0 0.0
        %520 = vmatprep.subr.mxu0 0.0
        %521 = vmatpush2.msra.mxu0 0.0
        %522 = vmatprep.subr.mxu0 0.0
        %523 = vmatpush2.msra.mxu0 0.0
        %524 = vmatprep.subr.mxu0 0.0
        %525 = vmatpush2.msra.mxu0 0.0
        %526 = vmatprep.subr.mxu0 0.0
        %527 = vmatpush2.msra.mxu0 0.0
        %528 = vmatprep.subr.mxu0 0.0
        %529 = vmatpush2.msra.mxu0 0.0
        %530 = vmatprep.subr.mxu0 0.0
        %531 = vmatpush2.msra.mxu0 0.0
        %532 = vmatprep.subr.mxu0 0.0
        %533 = vmatpush2.msra.mxu0 0.0
        %534 = vmatprep.subr.mxu0 0.0
        %535 = vmatpush2.msra.mxu0 0.0
        %536 = vmatprep.subr.mxu0 0.0
        %537 = vmatpush2.msra.mxu0 0.0
        %538 = vmatprep.subr.mxu0 0.0
        %539 = vmatpush2.msra.mxu0 0.0
        %540 = vmatprep.subr.mxu0 0.0
        %541 = vmatpush2.msra.mxu0 0.0
        %542 = vmatprep.subr.mxu0 0.0
        %543 = vmatpush2.msra.mxu0 0.0
        %544 = vmatprep.mubr.f32.mxu0 0.0
        %545 = vmatmul.mubr.f32.gmra.mxu0 %v478
        %v546 = vpop.f32.mrf.mxu0
        %v547 = vadd.f32 0.0, %v546
        %v548 = vpop.f32.mrf.mxu0
        %549 = vdwg.mxu0
        %v550 = vld [vmem:[#allocation7] sm:$0xff]
        %v551 = vld [vmem:[#allocation7 + $0x8] sm:$0xff]
        %v552 = vld [vmem:[#allocation7 + $0x10] sm:$0xff]
        %v553 = vld [vmem:[#allocation7 + $0x18] sm:$0xff]
        %v555 = vsel %vm476, %v470, 0
        %557 = vmatprep.subr.mxu0 0.0
        %558 = vmatpush1.msra.mxu0 0.0
        %559 = vmatprep.subr.mxu0 0.0
        %560 = vmatpush1.msra.mxu0 0.0
        %561 = vmatprep.subr.mxu0 0.0
        %562 = vmatpush1.msra.mxu0 0.0
        %563 = vmatprep.subr.mxu0 0.0
        %564 = vmatpush1.msra.mxu0 0.0
        %565 = vmatprep.subr.mxu0 0.0
        %566 = vmatpush1.msra.mxu0 0.0
        %567 = vmatprep.subr.mxu0 0.0
        %568 = vmatpush1.msra.mxu0 0.0
        %569 = vmatprep.subr.mxu0 0.0
        %570 = vmatpush1.msra.mxu0 0.0
        %571 = vmatprep.subr.mxu0 0.0
        %572 = vmatpush1.msra.mxu0 0.0
        %573 = vmatprep.subr.mxu0 0.0
        %574 = vmatpush1.msra.mxu0 0.0
        %575 = vmatprep.subr.mxu0 0.0
        %576 = vmatpush1.msra.mxu0 0.0
        %577 = vmatprep.subr.mxu0 0.0
        %578 = vmatpush1.msra.mxu0 0.0
        %579 = vmatprep.subr.mxu0 0.0
        %580 = vmatpush1.msra.mxu0 0.0
        %581 = vmatprep.subr.mxu0 0.0
        %582 = vmatpush1.msra.mxu0 %v553
        %583 = vmatprep.subr.mxu0 0.0
        %584 = vmatpush1.msra.mxu0 %v552
        %585 = vmatprep.subr.mxu0 0.0
        %586 = vmatpush1.msra.mxu0 %v551
        %587 = vmatprep.subr.mxu0 0.0
        %588 = vmatpush1.msra.mxu0 %v550
        %589 = vmatprep.subr.mxu0 0.0
        %590 = vmatpush2.msra.mxu0 0.0
        %591 = vmatprep.subr.mxu0 0.0
        %592 = vmatpush2.msra.mxu0 0.0
        %593 = vmatprep.subr.mxu0 0.0
        %594 = vmatpush2.msra.mxu0 0.0
        %595 = vmatprep.subr.mxu0 0.0
        %596 = vmatpush2.msra.mxu0 0.0
        %597 = vmatprep.subr.mxu0 0.0
        %598 = vmatpush2.msra.mxu0 0.0
        %599 = vmatprep.subr.mxu0 0.0
        %600 = vmatpush2.msra.mxu0 0.0
        %601 = vmatprep.subr.mxu0 0.0
        %602 = vmatpush2.msra.mxu0 0.0
        %603 = vmatprep.subr.mxu0 0.0
        %604 = vmatpush2.msra.mxu0 0.0
        %605 = vmatprep.subr.mxu0 0.0
        %606 = vmatpush2.msra.mxu0 0.0
        %607 = vmatprep.subr.mxu0 0.0
        %608 = vmatpush2.msra.mxu0 0.0
        %609 = vmatprep.subr.mxu0 0.0
        %610 = vmatpush2.msra.mxu0 0.0
        %611 = vmatprep.subr.mxu0 0.0
        %612 = vmatpush2.msra.mxu0 0.0
        %613 = vmatprep.subr.mxu0 0.0
        %614 = vmatpush2.msra.mxu0 0.0
        %615 = vmatprep.subr.mxu0 0.0
        %616 = vmatpush2.msra.mxu0 0.0
        %617 = vmatprep.subr.mxu0 0.0
        %618 = vmatpush2.msra.mxu0 0.0
        %619 = vmatprep.subr.mxu0 0.0
        %620 = vmatpush2.msra.mxu0 0.0
        %621 = vmatprep.mubr.f32.mxu0 0.0
        %622 = vmatmul.mubr.f32.gmra.mxu0 %v555
        %v623 = vpop.f32.mrf.mxu0
        %v624 = vadd.f32 0.0, %v623
        %v625 = vpop.f32.mrf.mxu0
        %626 = vdwg.mxu0
        %v627 = vld [vmem:[#allocation8] sm:$0xff]
        %v628 = vld [vmem:[#allocation8 + $0x8] sm:$0xff]
        %v629 = vld [vmem:[#allocation8 + $0x10] sm:$0xff]
        %v630 = vld [vmem:[#allocation8 + $0x18] sm:$0xff]
        %v632 = vsel %vm476, %v471, 0
        %634 = vmatprep.subr.mxu0 0.0
        %635 = vmatpush1.msra.mxu0 0.0
        %636 = vmatprep.subr.mxu0 0.0
        %637 = vmatpush1.msra.mxu0 0.0
        %638 = vmatprep.subr.mxu0 0.0
        %639 = vmatpush1.msra.mxu0 0.0
        %640 = vmatprep.subr.mxu0 0.0
        %641 = vmatpush1.msra.mxu0 0.0
        %642 = vmatprep.subr.mxu0 0.0
        %643 = vmatpush1.msra.mxu0 0.0
        %644 = vmatprep.subr.mxu0 0.0
        %645 = vmatpush1.msra.mxu0 0.0
        %646 = vmatprep.subr.mxu0 0.0
        %647 = vmatpush1.msra.mxu0 0.0
        %648 = vmatprep.subr.mxu0 0.0
        %649 = vmatpush1.msra.mxu0 0.0
        %650 = vmatprep.subr.mxu0 0.0
        %651 = vmatpush1.msra.mxu0 0.0
        %652 = vmatprep.subr.mxu0 0.0
        %653 = vmatpush1.msra.mxu0 0.0
        %654 = vmatprep.subr.mxu0 0.0
        %655 = vmatpush1.msra.mxu0 0.0
        %656 = vmatprep.subr.mxu0 0.0
        %657 = vmatpush1.msra.mxu0 0.0
        %658 = vmatprep.subr.mxu0 0.0
        %659 = vmatpush1.msra.mxu0 %v630
        %660 = vmatprep.subr.mxu0 0.0
        %661 = vmatpush1.msra.mxu0 %v629
        %662 = vmatprep.subr.mxu0 0.0
        %663 = vmatpush1.msra.mxu0 %v628
        %664 = vmatprep.subr.mxu0 0.0
        %665 = vmatpush1.msra.mxu0 %v627
        %666 = vmatprep.subr.mxu0 0.0
        %667 = vmatpush2.msra.mxu0 0.0
        %668 = vmatprep.subr.mxu0 0.0
        %669 = vmatpush2.msra.mxu0 0.0
        %670 = vmatprep.subr.mxu0 0.0
        %671 = vmatpush2.msra.mxu0 0.0
        %672 = vmatprep.subr.mxu0 0.0
        %673 = vmatpush2.msra.mxu0 0.0
        %674 = vmatprep.subr.mxu0 0.0
        %675 = vmatpush2.msra.mxu0 0.0
        %676 = vmatprep.subr.mxu0 0.0
        %677 = vmatpush2.msra.mxu0 0.0
        %678 = vmatprep.subr.mxu0 0.0
        %679 = vmatpush2.msra.mxu0 0.0
        %680 = vmatprep.subr.mxu0 0.0
        %681 = vmatpush2.msra.mxu0 0.0
        %682 = vmatprep.subr.mxu0 0.0
        %683 = vmatpush2.msra.mxu0 0.0
        %684 = vmatprep.subr.mxu0 0.0
        %685 = vmatpush2.msra.mxu0 0.0
        %686 = vmatprep.subr.mxu0 0.0
        %687 = vmatpush2.msra.mxu0 0.0
        %688 = vmatprep.subr.mxu0 0.0
        %689 = vmatpush2.msra.mxu0 0.0
        %690 = vmatprep.subr.mxu0 0.0
        %691 = vmatpush2.msra.mxu0 0.0
        %692 = vmatprep.subr.mxu0 0.0
        %693 = vmatpush2.msra.mxu0 0.0
        %694 = vmatprep.subr.mxu0 0.0
        %695 = vmatpush2.msra.mxu0 0.0
        %696 = vmatprep.subr.mxu0 0.0
        %697 = vmatpush2.msra.mxu0 0.0
        %698 = vmatprep.mubr.f32.mxu0 0.0
        %699 = vmatmul.mubr.f32.gmra.mxu0 %v632
        %v700 = vpop.f32.mrf.mxu0
        %v701 = vadd.f32 0.0, %v700
        %v702 = vpop.f32.mrf.mxu0
        %703 = vdwg.mxu0
        %v704 = vld [vmem:[%s8] sm:$0xff]
        %v705 = vld [vmem:[%s8 + $0x8] sm:$0xff]
        %v706 = vld [vmem:[%s8 + $0x10] sm:$0xff]
        %v707 = vld [vmem:[%s8 + $0x18] sm:$0xff]
        %v708 = vlaneseq
        %v709 = vshrl.u32 %v708, 7
        %v710 = vsub.s32 0, %v709
        %v711 = vrot.slane %v547, %v710
        %713 = vbcast.lane.b32.xlu0 %v711, 256
        %v714 = vpop.permute.xlu0 %713
        %s716 = sor.u32 256, 8
        %717 = vbcast.lane.b32.xlu0 %v711, %s716
        %v718 = vpop.permute.xlu0 %717
        %s720 = sor.u32 256, 16
        %721 = vbcast.lane.b32.xlu0 %v711, %s720
        %v722 = vpop.permute.xlu0 %721
        %s724 = sor.u32 256, 24
        %725 = vbcast.lane.b32.xlu0 %v711, %s724
        %v726 = vpop.permute.xlu0 %725
        %v727 = vmul.f32 %v714, %v704
        %v728 = vmul.f32 %v718, %v705
        %v729 = vmul.f32 %v722, %v706
        %v730 = vmul.f32 %v726, %v707
        %v732 = vsel %vm476, %v624, 0
        %734 = vmatprep.subr.mxu0 0.0
        %735 = vmatpush1.msra.mxu0 0.0
        %736 = vmatprep.subr.mxu0 0.0
        %737 = vmatpush1.msra.mxu0 0.0
        %738 = vmatprep.subr.mxu0 0.0
        %739 = vmatpush1.msra.mxu0 0.0
        %740 = vmatprep.subr.mxu0 0.0
        %741 = vmatpush1.msra.mxu0 0.0
        %742 = vmatprep.subr.mxu0 0.0
        %743 = vmatpush1.msra.mxu0 0.0
        %744 = vmatprep.subr.mxu0 0.0
        %745 = vmatpush1.msra.mxu0 0.0
        %746 = vmatprep.subr.mxu0 0.0
        %747 = vmatpush1.msra.mxu0 0.0
        %748 = vmatprep.subr.mxu0 0.0
        %749 = vmatpush1.msra.mxu0 0.0
        %750 = vmatprep.subr.mxu0 0.0
        %751 = vmatpush1.msra.mxu0 0.0
        %752 = vmatprep.subr.mxu0 0.0
        %753 = vmatpush1.msra.mxu0 0.0
        %754 = vmatprep.subr.mxu0 0.0
        %755 = vmatpush1.msra.mxu0 0.0
        %756 = vmatprep.subr.mxu0 0.0
        %757 = vmatpush1.msra.mxu0 0.0
        %758 = vmatprep.subr.mxu0 0.0
        %759 = vmatpush1.msra.mxu0 %v730
        %760 = vmatprep.subr.mxu0 0.0
        %761 = vmatpush1.msra.mxu0 %v729
        %762 = vmatprep.subr.mxu0 0.0
        %763 = vmatpush1.msra.mxu0 %v728
        %764 = vmatprep.subr.mxu0 0.0
        %765 = vmatpush1.msra.mxu0 %v727
        %766 = vmatprep.subr.mxu0 0.0
        %767 = vmatpush2.msra.mxu0 0.0
        %768 = vmatprep.subr.mxu0 0.0
        %769 = vmatpush2.msra.mxu0 0.0
        %770 = vmatprep.subr.mxu0 0.0
        %771 = vmatpush2.msra.mxu0 0.0
        %772 = vmatprep.subr.mxu0 0.0
        %773 = vmatpush2.msra.mxu0 0.0
        %774 = vmatprep.subr.mxu0 0.0
        %775 = vmatpush2.msra.mxu0 0.0
        %776 = vmatprep.subr.mxu0 0.0
        %777 = vmatpush2.msra.mxu0 0.0
        %778 = vmatprep.subr.mxu0 0.0
        %779 = vmatpush2.msra.mxu0 0.0
        %780 = vmatprep.subr.mxu0 0.0
        %781 = vmatpush2.msra.mxu0 0.0
        %782 = vmatprep.subr.mxu0 0.0
        %783 = vmatpush2.msra.mxu0 0.0
        %784 = vmatprep.subr.mxu0 0.0
        %785 = vmatpush2.msra.mxu0 0.0
        %786 = vmatprep.subr.mxu0 0.0
        %787 = vmatpush2.msra.mxu0 0.0
        %788 = vmatprep.subr.mxu0 0.0
        %789 = vmatpush2.msra.mxu0 0.0
        %790 = vmatprep.subr.mxu0 0.0
        %791 = vmatpush2.msra.mxu0 0.0
        %792 = vmatprep.subr.mxu0 0.0
        %793 = vmatpush2.msra.mxu0 0.0
        %794 = vmatprep.subr.mxu0 0.0
        %795 = vmatpush2.msra.mxu0 0.0
        %796 = vmatprep.subr.mxu0 0.0
        %797 = vmatpush2.msra.mxu0 0.0
        %798 = vmatprep.mubr.f32.mxu0 0.0
        %799 = vmatmul.mubr.f32.gmra.mxu0 %v732
        %v800 = vpop.f32.mrf.mxu0
        %v801 = vadd.f32 0.0, %v800
        %v802 = vpop.f32.mrf.mxu0
        %803 = vdwg.mxu0
        %804 = vxpose.xlu0.b32.start [1/16] %v801, 128
        %805 = vxpose.xlu0.b32.cont [2/16] 0.0, 128
        %806 = vxpose.xlu0.b32.cont [3/16] 0.0, 128
        %807 = vxpose.xlu0.b32.cont [4/16] 0.0, 128
        %808 = vxpose.xlu0.b32.cont [5/16] 0.0, 128
        %809 = vxpose.xlu0.b32.cont [6/16] 0.0, 128
        %810 = vxpose.xlu0.b32.cont [7/16] 0.0, 128
        %811 = vxpose.xlu0.b32.cont [8/16] 0.0, 128
        %812 = vxpose.xlu0.b32.cont [9/16] 0.0, 128
        %813 = vxpose.xlu0.b32.cont [10/16] 0.0, 128
        %814 = vxpose.xlu0.b32.cont [11/16] 0.0, 128
        %815 = vxpose.xlu0.b32.cont [12/16] 0.0, 128
        %816 = vxpose.xlu0.b32.cont [13/16] 0.0, 128
        %817 = vxpose.xlu0.b32.cont [14/16] 0.0, 128
        %818 = vxpose.xlu0.b32.cont [15/16] 0.0, 128
        %819 = vxpose.xlu0.b32.end [16/16] 0.0, 128
        %v820 = vpop.trf.xlu0
        %v821 = vpop.trf.xlu0
        %v822 = vpop.trf.xlu0
        %v823 = vpop.trf.xlu0
        %v824 = vpop.trf.xlu0
        %v825 = vpop.trf.xlu0
        %v826 = vpop.trf.xlu0
        %v827 = vpop.trf.xlu0
        %v828 = vpop.trf.xlu0
        %v829 = vpop.trf.xlu0
        %v830 = vpop.trf.xlu0
        %v831 = vpop.trf.xlu0
        %v832 = vpop.trf.xlu0
        %v833 = vpop.trf.xlu0
        %v834 = vpop.trf.xlu0
        %v835 = vpop.trf.xlu0
        %vm836 = vcmask 60416
        %v837 = vsel %vm836, %v820, -inf
        %838 = vmax.xlane.f32.xlu0 %v837
        %v839 = vpop.xlane.xlu0 %838
        %v840 = vsub.f32 %v820, %v839
        %v841 = vmul.f32 %v840, 1.442695
        %v842 = vpow.pop %v841
        %v843 = vsel %vm836, %v842, 0.0
        %844 = vadd.xlane.f32.xlu0 %v843
        %v845 = vpop.xlane.xlu0 %844
        %v846 = vrcp.pop %v845
        %v847 = vmul.f32 %v842, %v846
        %vm848 = vcmask 64512
        %v850 = vsel %vm848, %v847, 0
        %852 = vmatprep.subr.mxu0 0.0
        %853 = vmatpush1.msra.mxu0 0.0
        %854 = vmatprep.subr.mxu0 0.0
        %855 = vmatpush1.msra.mxu0 0.0
        %856 = vmatprep.subr.mxu0 0.0
        %857 = vmatpush1.msra.mxu0 0.0
        %858 = vmatprep.subr.mxu0 0.0
        %859 = vmatpush1.msra.mxu0 0.0
        %860 = vmatprep.subr.mxu0 0.0
        %861 = vmatpush1.msra.mxu0 0.0
        %862 = vmatprep.subr.mxu0 0.0
        %863 = vmatpush1.msra.mxu0 0.0
        %864 = vmatprep.subr.mxu0 0.0
        %865 = vmatpush1.msra.mxu0 0.0
        %866 = vmatprep.subr.mxu0 0.0
        %867 = vmatpush1.msra.mxu0 0.0
        %868 = vmatprep.subr.mxu0 0.0
        %869 = vmatpush1.msra.mxu0 0.0
        %870 = vmatprep.subr.mxu0 0.0
        %871 = vmatpush1.msra.mxu0 0.0
        %872 = vmatprep.subr.mxu0 0.0
        %873 = vmatpush1.msra.mxu0 0.0
        %874 = vmatprep.subr.mxu0 0.0
        %875 = vmatpush1.msra.mxu0 0.0
        %876 = vmatprep.subr.mxu0 0.0
        %877 = vmatpush1.msra.mxu0 0.0
        %878 = vmatprep.subr.mxu0 0.0
        %879 = vmatpush1.msra.mxu0 0.0
        %880 = vmatprep.subr.mxu0 0.0
        %881 = vmatpush1.msra.mxu0 0.0
        %882 = vmatprep.subr.mxu0 0.0
        %883 = vmatpush1.msra.mxu0 %v701
        %884 = vmatprep.subr.mxu0 0.0
        %885 = vmatpush2.msra.mxu0 0.0
        %886 = vmatprep.subr.mxu0 0.0
        %887 = vmatpush2.msra.mxu0 0.0
        %888 = vmatprep.subr.mxu0 0.0
        %889 = vmatpush2.msra.mxu0 0.0
        %890 = vmatprep.subr.mxu0 0.0
        %891 = vmatpush2.msra.mxu0 0.0
        %892 = vmatprep.subr.mxu0 0.0
        %893 = vmatpush2.msra.mxu0 0.0
        %894 = vmatprep.subr.mxu0 0.0
        %895 = vmatpush2.msra.mxu0 0.0
        %896 = vmatprep.subr.mxu0 0.0
        %897 = vmatpush2.msra.mxu0 0.0
        %898 = vmatprep.subr.mxu0 0.0
        %899 = vmatpush2.msra.mxu0 0.0
        %900 = vmatprep.subr.mxu0 0.0
        %901 = vmatpush2.msra.mxu0 0.0
        %902 = vmatprep.subr.mxu0 0.0
        %903 = vmatpush2.msra.mxu0 0.0
        %904 = vmatprep.subr.mxu0 0.0
        %905 = vmatpush2.msra.mxu0 0.0
        %906 = vmatprep.subr.mxu0 0.0
        %907 = vmatpush2.msra.mxu0 0.0
        %908 = vmatprep.subr.mxu0 0.0
        %909 = vmatpush2.msra.mxu0 0.0
        %910 = vmatprep.subr.mxu0 0.0
        %911 = vmatpush2.msra.mxu0 0.0
        %912 = vmatprep.subr.mxu0 0.0
        %913 = vmatpush2.msra.mxu0 0.0
        %914 = vmatprep.subr.mxu0 0.0
        %915 = vmatpush2.msra.mxu0 0.0
        %916 = vmatprep.mubr.f32.mxu0 0.0
        %917 = vmatmul.mubr.f32.gmra.mxu0 %v850
        %v918 = vpop.f32.mrf.mxu0
        %v919 = vadd.f32 0.0, %v918
        %v920 = vpop.f32.mrf.mxu0
        %921 = vdwg.mxu0
        %v922 = vld [vmem:[%s9] sm:$0xf]
        %v923 = vmul.f32 %v919, %v922
        %vm924 = vcmask 257024
        %v925 = vsel %vm924, %v923, 0.0
        %v926 = vrot.slane %v925, 4
        %v927 = vadd.f32 %v925, %v926
        %v928 = vrot.slane %v927, 2
        %v929 = vadd.f32 %v927, %v928
        %v930 = vrot.slane %v929, 1
        %v931 = vadd.f32 %v929, %v930
        %v932 = vld [vmem:[#allocation10] sm:$0xff]
        %v933 = vld [vmem:[#allocation10 + $0x8] sm:$0xff]
        %v934 = vld [vmem:[#allocation10 + $0x10] sm:$0xff]
        %v935 = vld [vmem:[#allocation10 + $0x18] sm:$0xff]
        %v936 = vld [vmem:[%s7] sm:$0x1]
        %v938 = vsel %vm476, %v931, 0
        %940 = vmatprep.subr.mxu0 0.0
        %941 = vmatpush1.msra.mxu0 0.0
        %942 = vmatprep.subr.mxu0 0.0
        %943 = vmatpush1.msra.mxu0 0.0
        %944 = vmatprep.subr.mxu0 0.0
        %945 = vmatpush1.msra.mxu0 0.0
        %946 = vmatprep.subr.mxu0 0.0
        %947 = vmatpush1.msra.mxu0 0.0
        %948 = vmatprep.subr.mxu0 0.0
        %949 = vmatpush1.msra.mxu0 0.0
        %950 = vmatprep.subr.mxu0 0.0
        %951 = vmatpush1.msra.mxu0 0.0
        %952 = vmatprep.subr.mxu0 0.0
        %953 = vmatpush1.msra.mxu0 0.0
        %954 = vmatprep.subr.mxu0 0.0
        %955 = vmatpush1.msra.mxu0 0.0
        %956 = vmatprep.subr.mxu0 0.0
        %957 = vmatpush1.msra.mxu0 0.0
        %958 = vmatprep.subr.mxu0 0.0
        %959 = vmatpush1.msra.mxu0 0.0
        %960 = vmatprep.subr.mxu0 0.0
        %961 = vmatpush1.msra.mxu0 0.0
        %962 = vmatprep.subr.mxu0 0.0
        %963 = vmatpush1.msra.mxu0 0.0
        %964 = vmatprep.subr.mxu0 0.0
        %965 = vmatpush1.msra.mxu0 %v935
        %966 = vmatprep.subr.mxu0 0.0
        %967 = vmatpush1.msra.mxu0 %v934
        %968 = vmatprep.subr.mxu0 0.0
        %969 = vmatpush1.msra.mxu0 %v933
        %970 = vmatprep.subr.mxu0 0.0
        %971 = vmatpush1.msra.mxu0 %v932
        %972 = vmatprep.subr.mxu0 0.0
        %973 = vmatpush2.msra.mxu0 0.0
        %974 = vmatprep.subr.mxu0 0.0
        %975 = vmatpush2.msra.mxu0 0.0
        %976 = vmatprep.subr.mxu0 0.0
        %977 = vmatpush2.msra.mxu0 0.0
        %978 = vmatprep.subr.mxu0 0.0
        %979 = vmatpush2.msra.mxu0 0.0
        %980 = vmatprep.subr.mxu0 0.0
        %981 = vmatpush2.msra.mxu0 0.0
        %982 = vmatprep.subr.mxu0 0.0
        %983 = vmatpush2.msra.mxu0 0.0
        %984 = vmatprep.subr.mxu0 0.0
        %985 = vmatpush2.msra.mxu0 0.0
        %986 = vmatprep.subr.mxu0 0.0
        %987 = vmatpush2.msra.mxu0 0.0
        %988 = vmatprep.subr.mxu0 0.0
        %989 = vmatpush2.msra.mxu0 0.0
        %990 = vmatprep.subr.mxu0 0.0
        %991 = vmatpush2.msra.mxu0 0.0
        %992 = vmatprep.subr.mxu0 0.0
        %993 = vmatpush2.msra.mxu0 0.0
        %994 = vmatprep.subr.mxu0 0.0
        %995 = vmatpush2.msra.mxu0 0.0
        %996 = vmatprep.subr.mxu0 0.0
        %997 = vmatpush2.msra.mxu0 0.0
        %998 = vmatprep.subr.mxu0 0.0
        %999 = vmatpush2.msra.mxu0 0.0
        %1000 = vmatprep.subr.mxu0 0.0
        %1001 = vmatpush2.msra.mxu0 0.0
        %1002 = vmatprep.subr.mxu0 0.0
        %1003 = vmatpush2.msra.mxu0 0.0
        %1004 = vmatprep.mubr.f32.mxu0 0.0
        %1005 = vmatmul.mubr.f32.gmra.mxu0 %v938
        %v1006 = vpop.f32.mrf.mxu0
        %v1007 = vadd.f32 %v936, %v1006
        %v1008 = vpop.f32.mrf.mxu0
        %1009 = vdwg.mxu0
        %v1010 = vlaneseq
        %v1011 = vshrl.u32 %v1010, 7
        %v1012 = vsub.s32 0, %v1011
        %v1013 = vrot.slane %v1007, %v1012
        %v1014 = vadd.f32 %v1013, %v471
        %1015 = vst.msk [vmem:[%s465] sm:$0xff] %vm476, %v1014
        %s1016 = sand.u32 %s264, 1
        %s1017 = scalar_lea.sflag [#allocation4], %s1016
        %s1018 = sand.u32 %s264, 1
        %s1019 = smul.addr %s1018, 8
        %s1020 = scalar_lea.vmem [#allocation11], %s1019
        // Predicated region
        $region81: #{tpu_custom_call.1} parent=59 // pred_check
          %p1021 = pneg %p274
        $region82: #{tpu_custom_call.1} parent=59 // pred_check_branch
          %1023 = sbr.rel (%p1021) target = $region84
        $region83: #{tpu_custom_call.1} parent=59 // pred_region
          %s1025 = ssub.s32 128, 128
          %1026 = vsyncadd %s1017, %s1025
          %s1027 = smul.addr %s31, 128
          %s1028 = scalar_lea.hbm %s10, %s1027
          %s1030 = sshll.u32 %s1020, 4
          %s1031 = int_to_ptr.vmem [resolvable:$true] %s1030
          %1033 = dma.vmem_to_hbm [thread:$0]  %s1031, 128, %s1028, %s1017
        $region84: #{tpu_custom_call.1} parent=59 // pred_fallthru
          _
      $region60: #{tpu_custom_call.1} parent=5 // pred_fallthru
        _
      %p1034 = scmp.le.s32.totalorder 2, %s26
      // Predicated region
      $region85: #{tpu_custom_call.1} parent=5 // pred_check
        %p1035 = pneg %p1034
      $region86: #{tpu_custom_call.1} parent=5 // pred_check_branch
        %1037 = sbr.rel (%p1035) target = $region88
      $region87: #{tpu_custom_call.1} parent=5 // pred_region
        %s1038 = ssub.s32 %s26, 2
        // Predicated region
        $region89: #{tpu_custom_call.1} parent=87 // pred_check
          %p1039 = pneg %p280
        $region90: #{tpu_custom_call.1} parent=87 // pred_check_branch
          %1041 = sbr.rel (%p1039) target = $region92
        $region91: #{tpu_custom_call.1} parent=87 // pred_region
          %s1042 = sand.u32 %s265, 1
          %s1043 = scalar_lea.sflag [#allocation4], %s1042
          %s1044 = sand.u32 %s265, 1
          %s1045 = smul.addr %s1044, 8
          %s1046 = scalar_lea.vmem [#allocation11], %s1045
          %1047 = dma.done %s1043, 128
        $region92: #{tpu_custom_call.1} parent=87 // pred_fallthru
          _
      $region88: #{tpu_custom_call.1} parent=5 // pred_fallthru
        _
    $region6: #{tpu_custom_call.1} parent=1 // loop_footer
      %s30 = sadd.s32 1, %s26
    $region7: #{tpu_custom_call.1} parent=1 // loop_footer_branch
      %25 = sbr.rel target = $region3
    $region8: #{tpu_custom_call.1} parent=1 // loop_exit
      _
    %1048 = vsyncpa [#allocation3], 1
    %s1049 = scalar_lea.sflag [#allocation3], 1
    %1050 = vsyncpa %s1049, 1
    %1051 = vsyncpa [#allocation6], 1
    %s1052 = scalar_lea.sflag [#allocation6], 1
    %1053 = vsyncpa %s1052, 1
    %1054 = vsyncpa [#allocation9], 1
    %1055 = vsyncpa [#allocation4], 1
    %s1056 = scalar_lea.sflag [#allocation4], 1
    %1057 = vsyncpa %s1056, 1

// kernel: tpu_custom_call.1
$region0: #{tpu_custom_call.1}
  #allocation0 [shape = 'u32[]', space=smem, size = 0x4, offset = 0x4, fixed_abs, tag = 'smem constant byte address 0x4 - core index']
  #allocation1 [shape = 'u32[144,128]{1,0:T(1,128)}', space=vmem, size = 0x12000, scoped, tag = 'internal scratch']
  %s0 = inlined_call_operand.vmem [shape: f32[2,1,32], index: 0, kind: input, shape index: {}]
  %s1 = inlined_call_operand.hbm [shape: f32[2,8,32], index: 1, kind: input, shape index: {}]
  %s2 = inlined_call_operand.hbm [shape: f32[2,8,32], index: 2, kind: input, shape index: {}]
  %s3 = inlined_call_operand.vmem [shape: f32[32,32], index: 3, kind: input, shape index: {}]
  %s4 = inlined_call_operand.hbm [shape: f32[32,32], index: 4, kind: input, shape index: {}]
  %s5 = inlined_call_operand.hbm [shape: f32[32,32], index: 5, kind: input, shape index: {}]
  %s6 = inlined_call_operand.hbm [shape: f32[32,32], index: 6, kind: input, shape index: {}]
  %s7 = inlined_call_operand.vmem [shape: f32[1,32], index: 7, kind: input, shape index: {}]
  %s8 = inlined_call_operand.vmem [shape: f32[32,4], index: 8, kind: input, shape index: {}]
  %s9 = inlined_call_operand.vmem [shape: f32[4,32], index: 9, kind: input, shape index: {}]
  %s10 = inlined_call_operand.hbm [shape: f32[2,8,32], index: 10, kind: output, shape index: {}]
  %s11 = sld [smem:[#allocation0]]
  $region93: #{tpu_custom_call.1} parent=0
    _
  %s13 = ssub.s32 1, %s11
  %s14 = scalar_select 0, %s13, %s11
  $region1: #{tpu_custom_call.1} parent=0
    #allocation2 [shape = 'u8[8192]{0}', space=vmem, size = 0x2000, scoped, tag = 'input window, operand 1']
    #allocation3 [shape = 's32[2]{0}', space=sflag, size = 0x8, scoped, tag = 'scoped memory for tpu_custom_call.1']
    #allocation4 [shape = 's32[2]{0}', space=sflag, size = 0x8, scoped, tag = 'scoped memory for tpu_custom_call.1']
    #allocation5 [shape = 'u8[8192]{0}', space=vmem, size = 0x2000, scoped, tag = 'input window, operand 2']
    #allocation6 [shape = 's32[2]{0}', space=sflag, size = 0x8, scoped, tag = 'scoped memory for tpu_custom_call.1']
    #allocation7 [shape = 'u8[16384]{0}', space=vmem, size = 0x4000, scoped, tag = 'input window, operand 4, single buffered']
    #allocation8 [shape = 'u8[16384]{0}', space=vmem, size = 0x4000, scoped, tag = 'input window, operand 5, single buffered']
    #allocation9 [shape = 's32[1]{0}', space=sflag, size = 0x4, scoped, tag = 'scoped memory for tpu_custom_call.1']
    #allocation10 [shape = 'u8[16384]{0}', space=vmem, size = 0x4000, scoped, tag = 'input window, operand 6, single buffered']
    #allocation11 [shape = 'u8[8192]{0}', space=vmem, size = 0x2000, scoped, tag = 'output window, operand 0']
    %15 = vsyncpa [#allocation3], 0
    %s16 = scalar_lea.sflag [#allocation3], 1
    %17 = vsyncpa %s16, 0
    %18 = vsyncpa [#allocation6], 0
    %s19 = scalar_lea.sflag [#allocation6], 1
    %20 = vsyncpa %s19, 0
    %21 = vsyncpa [#allocation9], 0
    %22 = vsyncpa [#allocation4], 0
    %s23 = scalar_lea.sflag [#allocation4], 1
    %24 = vsyncpa %s23, 0
    loop: start=0, step=1, limit=4
    $region2: #{tpu_custom_call.1} parent=1 // loop_pre_header
      _
    $region3: #{tpu_custom_call.1} parent=1 // loop_header
      %s26 = sphi 0, %s30
      %p27 = scmp.ge.s32.totalorder %s26, 4
      %s36 = sphi 0, %s38
      %s39 = sphi 0, %s36
      %s40 = sphi 0, %s39
      %s56 = sphi 0, %s40
      %s62 = sphi 0, %s64
      %s65 = sphi 0, %s62
      %s66 = sphi 0, %s65
      %s82 = sphi 0, %s66
      %s88 = sphi 0, %s90
      %s91 = sphi 0, %s88
      %s92 = sphi 0, %s91
      %s108 = sphi 0, %s92
      %s112 = sphi 0, %s112
      %s114 = sphi 0, %s112
      %s115 = sphi 0, %s114
      %s129 = sphi 0, %s115
      %s133 = sphi 0, %s133
      %s135 = sphi 0, %s133
      %s136 = sphi 0, %s135
      %s150 = sphi 0, %s136
      %s154 = sphi 0, %s154
      %s156 = sphi 0, %s154
      %s157 = sphi 0, %s156
      %s171 = sphi 0, %s157
      %s175 = sphi 0, %s175
      %s177 = sphi 0, %s175
      %s178 = sphi 0, %s177
      %s192 = sphi 0, %s178
      %s196 = sphi 0, %s196
      %s198 = sphi 0, %s196
      %s199 = sphi 0, %s198
      %s213 = sphi 0, %s199
      %s217 = sphi 0, %s217
      %s219 = sphi 0, %s217
      %s220 = sphi 0, %s219
      %s234 = sphi 0, %s220
      %s238 = sphi 0, %s238
      %s240 = sphi 0, %s238
      %s241 = sphi 0, %s240
      %s255 = sphi 0, %s241
      %s261 = sphi 0, %s263
      %s264 = sphi 0, %s261
      %s265 = sphi 0, %s264
      %s281 = sphi 0, %s265
    $region4: #{tpu_custom_call.1} parent=1 // loop_header_branch
      %29 = sbr.rel (%p27) target = $region8
    $region5: #{tpu_custom_call.1} parent=1 // loop_body
      %s31 = ssub.s32 %s26, 1
      %s32 = ssub.s32 %s26, 2
      %s33 = sadd.s32 %s26, 1
      %s34 = ssub.s32 %s26, %s33
      %p35 = scmp.eq.s32.totalorder %s34, 0
      %s37 = sadd.s32 %s36, 1
      %s38 = scalar_select %p35, %s36, %s37
      %p41 = pneg %p35
      %p42 = scmp.eq.s32.totalorder %s26, 1
      %p43 = por %p41, %p42
      %p44 = scmp.ne.s32.totalorder %s36, %s39
      %p45 = scmp.eq.s32.totalorder %s26, 0
      %p46 = por %p44, %p45
      %p47 = scmp.ne.s32.totalorder %s36, %s39
      %p48 = scmp.eq.s32.totalorder %s31, 1
      %p49 = por %p47, %p48
      %p50 = scmp.ne.s32.totalorder %s39, %s40
      %p51 = scmp.eq.s32.totalorder %s31, 0
      %p52 = por %p50, %p51
      %p53 = scmp.ne.s32.totalorder %s39, %s40
      %p54 = scmp.eq.s32.totalorder %s32, 1
      %p55 = por %p53, %p54
      %p57 = scmp.ne.s32.totalorder %s40, %s56
      %p58 = scmp.eq.s32.totalorder %s32, 0
      %p59 = por %p57, %p58
      %s60 = ssub.s32 %s26, %s33
      %p61 = scmp.eq.s32.totalorder %s60, 0
      %s63 = sadd.s32 %s62, 1
      %s64 = scalar_select %p61, %s62, %s63
      %p67 = pneg %p61
      %p68 = scmp.eq.s32.totalorder %s26, 1
      %p69 = por %p67, %p68
      %p70 = scmp.ne.s32.totalorder %s62, %s65
      %p71 = scmp.eq.s32.totalorder %s26, 0
      %p72 = por %p70, %p71
      %p73 = scmp.ne.s32.totalorder %s62, %s65
      %p74 = scmp.eq.s32.totalorder %s31, 1
      %p75 = por %p73, %p74
      %p76 = scmp.ne.s32.totalorder %s65, %s66
      %p77 = scmp.eq.s32.totalorder %s31, 0
      %p78 = por %p76, %p77
      %p79 = scmp.ne.s32.totalorder %s65, %s66
      %p80 = scmp.eq.s32.totalorder %s32, 1
      %p81 = por %p79, %p80
      %p83 = scmp.ne.s32.totalorder %s66, %s82
      %p84 = scmp.eq.s32.totalorder %s32, 0
      %p85 = por %p83, %p84
      %s86 = ssub.s32 %s26, %s33
      %p87 = scmp.eq.s32.totalorder %s86, 0
      %s89 = sadd.s32 %s88, 1
      %s90 = scalar_select %p87, %s88, %s89
      %p93 = pneg %p87
      %p94 = scmp.eq.s32.totalorder %s26, 1
      %p95 = por %p93, %p94
      %p96 = scmp.ne.s32.totalorder %s88, %s91
      %p97 = scmp.eq.s32.totalorder %s26, 0
      %p98 = por %p96, %p97
      %p99 = scmp.ne.s32.totalorder %s88, %s91
      %p100 = scmp.eq.s32.totalorder %s31, 1
      %p101 = por %p99, %p100
      %p102 = scmp.ne.s32.totalorder %s91, %s92
      %p103 = scmp.eq.s32.totalorder %s31, 0
      %p104 = por %p102, %p103
      %p105 = scmp.ne.s32.totalorder %s91, %s92
      %p106 = scmp.eq.s32.totalorder %s32, 1
      %p107 = por %p105, %p106
      %p109 = scmp.ne.s32.totalorder %s92, %s108
      %p110 = scmp.eq.s32.totalorder %s32, 0
      %p111 = por %p109, %p110
      %s113 = sadd.s32 %s112, 1
      %p116 = scmp.eq.s32.totalorder %s26, 1
      %p117 = scmp.ne.s32.totalorder %s112, %s114
      %p118 = scmp.eq.s32.totalorder %s26, 0
      %p119 = por %p117, %p118
      %p120 = scmp.ne.s32.totalorder %s112, %s114
      %p121 = scmp.eq.s32.totalorder %s31, 1
      %p122 = por %p120, %p121
      %p123 = scmp.ne.s32.totalorder %s114, %s115
      %p124 = scmp.eq.s32.totalorder %s31, 0
      %p125 = por %p123, %p124
      %p126 = scmp.ne.s32.totalorder %s114, %s115
      %p127 = scmp.eq.s32.totalorder %s32, 1
      %p128 = por %p126, %p127
      %p130 = scmp.ne.s32.totalorder %s115, %s129
      %p131 = scmp.eq.s32.totalorder %s32, 0
      %p132 = por %p130, %p131
      %s134 = sadd.s32 %s133, 1
      %p137 = scmp.eq.s32.totalorder %s26, 1
      %p138 = scmp.ne.s32.totalorder %s133, %s135
      %p139 = scmp.eq.s32.totalorder %s26, 0
      %p140 = por %p138, %p139
      %p141 = scmp.ne.s32.totalorder %s133, %s135
      %p142 = scmp.eq.s32.totalorder %s31, 1
      %p143 = por %p141, %p142
      %p144 = scmp.ne.s32.totalorder %s135, %s136
      %p145 = scmp.eq.s32.totalorder %s31, 0
      %p146 = por %p144, %p145
      %p147 = scmp.ne.s32.totalorder %s135, %s136
      %p148 = scmp.eq.s32.totalorder %s32, 1
      %p149 = por %p147, %p148
      %p151 = scmp.ne.s32.totalorder %s136, %s150
      %p152 = scmp.eq.s32.totalorder %s32, 0
      %p153 = por %p151, %p152
      %s155 = sadd.s32 %s154, 1
      %p158 = scmp.eq.s32.totalorder %s26, 1
      %p159 = scmp.ne.s32.totalorder %s154, %s156
      %p160 = scmp.eq.s32.totalorder %s26, 0
      %p161 = por %p159, %p160
      %p162 = scmp.ne.s32.totalorder %s154, %s156
      %p163 = scmp.eq.s32.totalorder %s31, 1
      %p164 = por %p162, %p163
      %p165 = scmp.ne.s32.totalorder %s156, %s157
      %p166 = scmp.eq.s32.totalorder %s31, 0
      %p167 = por %p165, %p166
      %p168 = scmp.ne.s32.totalorder %s156, %s157
      %p169 = scmp.eq.s32.totalorder %s32, 1
      %p170 = por %p168, %p169
      %p172 = scmp.ne.s32.totalorder %s157, %s171
      %p173 = scmp.eq.s32.totalorder %s32, 0
      %p174 = por %p172, %p173
      %s176 = sadd.s32 %s175, 1
      %p179 = scmp.eq.s32.totalorder %s26, 1
      %p180 = scmp.ne.s32.totalorder %s175, %s177
      %p181 = scmp.eq.s32.totalorder %s26, 0
      %p182 = por %p180, %p181
      %p183 = scmp.ne.s32.totalorder %s175, %s177
      %p184 = scmp.eq.s32.totalorder %s31, 1
      %p185 = por %p183, %p184
      %p186 = scmp.ne.s32.totalorder %s177, %s178
      %p187 = scmp.eq.s32.totalorder %s31, 0
      %p188 = por %p186, %p187
      %p189 = scmp.ne.s32.totalorder %s177, %s178
      %p190 = scmp.eq.s32.totalorder %s32, 1
      %p191 = por %p189, %p190
      %p193 = scmp.ne.s32.totalorder %s178, %s192
      %p194 = scmp.eq.s32.totalorder %s32, 0
      %p195 = por %p193, %p194
      %s197 = sadd.s32 %s196, 1
      %p200 = scmp.eq.s32.totalorder %s26, 1
      %p201 = scmp.ne.s32.totalorder %s196, %s198
      %p202 = scmp.eq.s32.totalorder %s26, 0
      %p203 = por %p201, %p202
      %p204 = scmp.ne.s32.totalorder %s196, %s198
      %p205 = scmp.eq.s32.totalorder %s31, 1
      %p206 = por %p204, %p205
      %p207 = scmp.ne.s32.totalorder %s198, %s199
      %p208 = scmp.eq.s32.totalorder %s31, 0
      %p209 = por %p207, %p208
      %p210 = scmp.ne.s32.totalorder %s198, %s199
      %p211 = scmp.eq.s32.totalorder %s32, 1
      %p212 = por %p210, %p211
      %p214 = scmp.ne.s32.totalorder %s199, %s213
      %p215 = scmp.eq.s32.totalorder %s32, 0
      %p216 = por %p214, %p215
      %s218 = sadd.s32 %s217, 1
      %p221 = scmp.eq.s32.totalorder %s26, 1
      %p222 = scmp.ne.s32.totalorder %s217, %s219
      %p223 = scmp.eq.s32.totalorder %s26, 0
      %p224 = por %p222, %p223
      %p225 = scmp.ne.s32.totalorder %s217, %s219
      %p226 = scmp.eq.s32.totalorder %s31, 1
      %p227 = por %p225, %p226
      %p228 = scmp.ne.s32.totalorder %s219, %s220
      %p229 = scmp.eq.s32.totalorder %s31, 0
      %p230 = por %p228, %p229
      %p231 = scmp.ne.s32.totalorder %s219, %s220
      %p232 = scmp.eq.s32.totalorder %s32, 1
      %p233 = por %p231, %p232
      %p235 = scmp.ne.s32.totalorder %s220, %s234
      %p236 = scmp.eq.s32.totalorder %s32, 0
      %p237 = por %p235, %p236
      %s239 = sadd.s32 %s238, 1
      %p242 = scmp.eq.s32.totalorder %s26, 1
      %p243 = scmp.ne.s32.totalorder %s238, %s240
      %p244 = scmp.eq.s32.totalorder %s26, 0
      %p245 = por %p243, %p244
      %p246 = scmp.ne.s32.totalorder %s238, %s240
      %p247 = scmp.eq.s32.totalorder %s31, 1
      %p248 = por %p246, %p247
      %p249 = scmp.ne.s32.totalorder %s240, %s241
      %p250 = scmp.eq.s32.totalorder %s31, 0
      %p251 = por %p249, %p250
      %p252 = scmp.ne.s32.totalorder %s240, %s241
      %p253 = scmp.eq.s32.totalorder %s32, 1
      %p254 = por %p252, %p253
      %p256 = scmp.ne.s32.totalorder %s241, %s255
      %p257 = scmp.eq.s32.totalorder %s32, 0
      %p258 = por %p256, %p257
      %s259 = ssub.s32 %s26, %s33
      %p260 = scmp.eq.s32.totalorder %s259, 0
      %s262 = sadd.s32 %s261, 1
      %s263 = scalar_select %p260, %s261, %s262
      %p266 = pneg %p260
      %p267 = scmp.eq.s32.totalorder %s26, 1
      %p268 = por %p266, %p267
      %p269 = scmp.ne.s32.totalorder %s261, %s264
      %p270 = scmp.eq.s32.totalorder %s26, 0
      %p271 = por %p269, %p270
      %p272 = scmp.ne.s32.totalorder %s261, %s264
      %p273 = scmp.eq.s32.totalorder %s31, 1
      %p274 = por %p272, %p273
      %p275 = scmp.ne.s32.totalorder %s264, %s265
      %p276 = scmp.eq.s32.totalorder %s31, 0
      %p277 = por %p275, %p276
      %p278 = scmp.ne.s32.totalorder %s264, %s265
      %p279 = scmp.eq.s32.totalorder %s32, 1
      %p280 = por %p278, %p279
      %p282 = scmp.ne.s32.totalorder %s265, %s281
      %p283 = scmp.eq.s32.totalorder %s32, 0
      %p284 = por %p282, %p283
      %p285 = scmp.le.s32.totalorder 1, %s26
      %p286 = scmp.lt.s32.totalorder %s26, 3
      %p287 = pnand %p285, %p286
      %p288 = pneg %p287
      // Predicated region
      $region9: #{tpu_custom_call.1} parent=5 // pred_check
        _
      $region10: #{tpu_custom_call.1} parent=5 // pred_check_branch
        %290 = sbr.rel (%p287) target = $region12
      $region11: #{tpu_custom_call.1} parent=5 // pred_region
        %s291 = ssub.s32 %s26, 1
        // Predicated region
        $region13: #{tpu_custom_call.1} parent=11 // pred_check
          %p292 = pneg %p125
        $region14: #{tpu_custom_call.1} parent=11 // pred_check_branch
          %294 = sbr.rel (%p292) target = $region16
        $region15: #{tpu_custom_call.1} parent=11 // pred_region
          _
        $region16: #{tpu_custom_call.1} parent=11 // pred_fallthru
          _
        // Predicated region
        $region17: #{tpu_custom_call.1} parent=11 // pred_check
          %p295 = pneg %p146
        $region18: #{tpu_custom_call.1} parent=11 // pred_check_branch
          %297 = sbr.rel (%p295) target = $region20
        $region19: #{tpu_custom_call.1} parent=11 // pred_region
          %s299 = ssub.s32 512, 512
          %300 = vsyncadd [#allocation6], %s299
          %s301 = sshll.u32 [#allocation7], 4
          %s302 = int_to_ptr.vmem [resolvable:$true] %s301
          %307 = dma.hbm_to_vmem [thread:$0]  %s4, 512, %s302, [#allocation6], 128, 128, 8
        $region20: #{tpu_custom_call.1} parent=11 // pred_fallthru
          _
        // Predicated region
        $region21: #{tpu_custom_call.1} parent=11 // pred_check
          %p308 = pneg %p167
        $region22: #{tpu_custom_call.1} parent=11 // pred_check_branch
          %310 = sbr.rel (%p308) target = $region24
        $region23: #{tpu_custom_call.1} parent=11 // pred_region
          %s312 = ssub.s32 512, 512
          %313 = vsyncadd [#allocation9], %s312
          %s314 = sshll.u32 [#allocation8], 4
          %s315 = int_to_ptr.vmem [resolvable:$true] %s314
          %320 = dma.hbm_to_vmem [thread:$0]  %s5, 512, %s315, [#allocation9], 128, 128, 8
        $region24: #{tpu_custom_call.1} parent=11 // pred_fallthru
          _
        // Predicated region
        $region25: #{tpu_custom_call.1} parent=11 // pred_check
          %p321 = pneg %p188
        $region26: #{tpu_custom_call.1} parent=11 // pred_check_branch
          %323 = sbr.rel (%p321) target = $region28
        $region27: #{tpu_custom_call.1} parent=11 // pred_region
          %s325 = ssub.s32 512, 512
          %326 = vsyncadd [#allocation9], %s325
          %s327 = sshll.u32 [#allocation10], 4
          %s328 = int_to_ptr.vmem [resolvable:$true] %s327
          %333 = dma.hbm_to_vmem [thread:$0]  %s6, 512, %s328, [#allocation9], 128, 128, 8
        $region28: #{tpu_custom_call.1} parent=11 // pred_fallthru
          _
        // Predicated region
        $region29: #{tpu_custom_call.1} parent=11 // pred_check
          %p334 = pneg %p209
        $region30: #{tpu_custom_call.1} parent=11 // pred_check_branch
          %336 = sbr.rel (%p334) target = $region32
        $region31: #{tpu_custom_call.1} parent=11 // pred_region
          _
        $region32: #{tpu_custom_call.1} parent=11 // pred_fallthru
          _
        // Predicated region
        $region33: #{tpu_custom_call.1} parent=11 // pred_check
          %p337 = pneg %p230
        $region34: #{tpu_custom_call.1} parent=11 // pred_check_branch
          %339 = sbr.rel (%p337) target = $region36
        $region35: #{tpu_custom_call.1} parent=11 // pred_region
          _
        $region36: #{tpu_custom_call.1} parent=11 // pred_fallthru
          _
        // Predicated region
        $region37: #{tpu_custom_call.1} parent=11 // pred_check
          %p340 = pneg %p251
        $region38: #{tpu_custom_call.1} parent=11 // pred_check_branch
          %342 = sbr.rel (%p340) target = $region40
        $region39: #{tpu_custom_call.1} parent=11 // pred_region
          _
        $region40: #{tpu_custom_call.1} parent=11 // pred_fallthru
          _
      $region12: #{tpu_custom_call.1} parent=5 // pred_fallthru
        _
      %p343 = scmp.lt.s32.totalorder %s26, 2
      // Predicated region
      $region41: #{tpu_custom_call.1} parent=5 // pred_check
        %p344 = pneg %p343
      $region42: #{tpu_custom_call.1} parent=5 // pred_check_branch
        %346 = sbr.rel (%p344) target = $region44
      $region43: #{tpu_custom_call.1} parent=5 // pred_region
        // Predicated region
        $region45: #{tpu_custom_call.1} parent=43 // pred_check
          %p347 = pneg %p46
        $region46: #{tpu_custom_call.1} parent=43 // pred_check_branch
          %349 = sbr.rel (%p347) target = $region48
        $region47: #{tpu_custom_call.1} parent=43 // pred_region
          %p350 = scmp.lt.s32.totalorder %s26, 1
          %s351 = scalar_select %p350, %s26, 1
          %s352 = scalar_lea.vmem %s0, %s351
        $region48: #{tpu_custom_call.1} parent=43 // pred_fallthru
          _
        // Predicated region
        $region49: #{tpu_custom_call.1} parent=43 // pred_check
          %p353 = pneg %p72
        $region50: #{tpu_custom_call.1} parent=43 // pred_check_branch
          %355 = sbr.rel (%p353) target = $region52
        $region51: #{tpu_custom_call.1} parent=43 // pred_region
          %s356 = sand.u32 %s62, 1
          %s357 = scalar_lea.sflag [#allocation3], %s356
          %s358 = sand.u32 %s62, 1
          %s359 = smul.addr %s358, 8
          %s360 = scalar_lea.vmem [#allocation2], %s359
          %s362 = ssub.s32 128, 128
          %363 = vsyncadd %s357, %s362
          %s364 = smul.addr %s26, 128
          %s365 = scalar_lea.hbm %s1, %s364
          %s367 = sshll.u32 %s360, 4
          %s368 = int_to_ptr.vmem [resolvable:$true] %s367
          %370 = dma.hbm_to_vmem [thread:$0]  %s365, 128, %s368, %s357
        $region52: #{tpu_custom_call.1} parent=43 // pred_fallthru
          _
        // Predicated region
        $region53: #{tpu_custom_call.1} parent=43 // pred_check
          %p371 = pneg %p98
        $region54: #{tpu_custom_call.1} parent=43 // pred_check_branch
          %373 = sbr.rel (%p371) target = $region56
        $region55: #{tpu_custom_call.1} parent=43 // pred_region
          %s374 = sand.u32 %s26, 1
          %s375 = scalar_lea.sflag [#allocation6], %s374
          %s376 = sand.u32 %s88, 1
          %s377 = smul.addr %s376, 8
          %s378 = scalar_lea.vmem [#allocation5], %s377
          %s380 = ssub.s32 128, 128
          %381 = vsyncadd %s375, %s380
          %s382 = smul.addr %s26, 128
          %s383 = scalar_lea.hbm %s2, %s382
          %s385 = sshll.u32 %s378, 4
          %s386 = int_to_ptr.vmem [resolvable:$true] %s385
          %388 = dma.hbm_to_vmem [thread:$0]  %s383, 128, %s386, %s375
        $region56: #{tpu_custom_call.1} parent=43 // pred_fallthru
          _
      $region44: #{tpu_custom_call.1} parent=5 // pred_fallthru
        _
      %p389 = scmp.le.s32.totalorder 1, %s26
      %p390 = scmp.lt.s32.totalorder %s26, 3
      %p391 = pnand %p389, %p390
      %p392 = pneg %p391
      // Predicated region
      $region57: #{tpu_custom_call.1} parent=5 // pred_check
        _
      $region58: #{tpu_custom_call.1} parent=5 // pred_check_branch
        %394 = sbr.rel (%p391) target = $region60
      $region59: #{tpu_custom_call.1} parent=5 // pred_region
        %s395 = ssub.s32 %s26, 1
        %s396 = sand.u32 %s65, 1
        %s397 = scalar_lea.sflag [#allocation3], %s396
        %s398 = sand.u32 %s65, 1
        %s399 = smul.addr %s398, 8
        %s400 = scalar_lea.vmem [#allocation2], %s399
        // Predicated region
        $region61: #{tpu_custom_call.1} parent=59 // pred_check
          %p401 = pneg %p78
        $region62: #{tpu_custom_call.1} parent=59 // pred_check_branch
          %403 = sbr.rel (%p401) target = $region64
        $region63: #{tpu_custom_call.1} parent=59 // pred_region
          %404 = dma.done %s397, 128
        $region64: #{tpu_custom_call.1} parent=59 // pred_fallthru
          _
        %s405 = sand.u32 %s31, 1
        %s406 = scalar_lea.sflag [#allocation6], %s405
        %s407 = sand.u32 %s91, 1
        %s408 = smul.addr %s407, 8
        %s409 = scalar_lea.vmem [#allocation5], %s408
        // Predicated region
        $region65: #{tpu_custom_call.1} parent=59 // pred_check
          %p410 = pneg %p104
        $region66: #{tpu_custom_call.1} parent=59 // pred_check_branch
          %412 = sbr.rel (%p410) target = $region68
        $region67: #{tpu_custom_call.1} parent=59 // pred_region
          %413 = dma.done %s406, 128
        $region68: #{tpu_custom_call.1} parent=59 // pred_fallthru
          _
        // Predicated region
        $region69: #{tpu_custom_call.1} parent=59 // pred_check
          %p414 = pneg %p146
        $region70: #{tpu_custom_call.1} parent=59 // pred_check_branch
          %416 = sbr.rel (%p414) target = $region72
        $region71: #{tpu_custom_call.1} parent=59 // pred_region
          %417 = dma.done [#allocation6], 512
        $region72: #{tpu_custom_call.1} parent=59 // pred_fallthru
          _
        // Predicated region
        $region73: #{tpu_custom_call.1} parent=59 // pred_check
          %p418 = pneg %p167
        $region74: #{tpu_custom_call.1} parent=59 // pred_check_branch
          %420 = sbr.rel (%p418) target = $region76
        $region75: #{tpu_custom_call.1} parent=59 // pred_region
          %421 = dma.done [#allocation9], 512
        $region76: #{tpu_custom_call.1} parent=59 // pred_fallthru
          _
        // Predicated region
        $region77: #{tpu_custom_call.1} parent=59 // pred_check
          %p422 = pneg %p188
        $region78: #{tpu_custom_call.1} parent=59 // pred_check_branch
          %424 = sbr.rel (%p422) target = $region80
        $region79: #{tpu_custom_call.1} parent=59 // pred_region
          %425 = dma.done [#allocation9], 512
        $region80: #{tpu_custom_call.1} parent=59 // pred_fallthru
          _
        %p426 = scmp.lt.s32.totalorder %s31, 1
        %s427 = scalar_select %p426, %s31, 1
        %s428 = scalar_lea.vmem %s0, %s427
        %p429 = pneg %p52
        %p430 = pneg %p49
        %s431 = sand.u32 %s65, 1
        %s432 = scalar_lea.sflag [#allocation3], %s431
        %s433 = sand.u32 %s65, 1
        %s434 = smul.addr %s433, 8
        %s435 = scalar_lea.vmem [#allocation2], %s434
        %p436 = pneg %p78
        %p437 = pneg %p75
        %s438 = sand.u32 %s31, 1
        %s439 = scalar_lea.sflag [#allocation6], %s438
        %s440 = sand.u32 %s91, 1
        %s441 = smul.addr %s440, 8
        %s442 = scalar_lea.vmem [#allocation5], %s441
        %p443 = pneg %p104
        %p444 = pneg %p101
        %p445 = pneg %p125
        %p446 = pneg %p122
        %p447 = pneg %p146
        %p448 = pneg %p143
        %p449 = pneg %p167
        %p450 = pneg %p164
        %p451 = pneg %p188
        %p452 = pneg %p185
        %p453 = pneg %p209
        %p454 = pneg %p206
        %p455 = pneg %p230
        %p456 = pneg %p227
        %p457 = pneg %p251
        %p458 = pneg %p248
        %p459 = pneg %p277
        %p460 = pneg %p274
        %s461 = sand.u32 %s264, 1
        %s462 = scalar_lea.sflag [#allocation4], %s461
        %s463 = sand.u32 %s264, 1
        %s464 = smul.addr %s463, 8
        %s465 = scalar_lea.vmem [#allocation11], %s464
        %p466 = scmp.lt.s32.totalorder %s31, 1
        %s467 = scalar_select %p466, %s31, 1
        %s468 = scalar_lea.vmem %s0, %s467
        %v469 = vld [vmem:[%s468] sm:$0x1]
        %v470 = vld [vmem:[%s400] sm:$0xff]
        %v471 = vld [vmem:[%s409] sm:$0xff]
        %v472 = vld [vmem:[%s3] sm:$0xff]
        %v473 = vld [vmem:[%s3 + $0x8] sm:$0xff]
        %v474 = vld [vmem:[%s3 + $0x10] sm:$0xff]
        %v475 = vld [vmem:[%s3 + $0x18] sm:$0xff]
        %vm476 = vcmask 261120
        %v478 = vsel %vm476, %v469, 0
        %480 = vmatprep.subr.mxu0 0.0
        %481 = vmatpush1.msra.mxu0 0.0
        %482 = vmatprep.subr.mxu0 0.0
        %483 = vmatpush1.msra.mxu0 0.0
        %484 = vmatprep.subr.mxu0 0.0
        %485 = vmatpush1.msra.mxu0 0.0
        %486 = vmatprep.subr.mxu0 0.0
        %487 = vmatpush1.msra.mxu0 0.0
        %488 = vmatprep.subr.mxu0 0.0
        %489 = vmatpush1.msra.mxu0 0.0
        %490 = vmatprep.subr.mxu0 0.0
        %491 = vmatpush1.msra.mxu0 0.0
        %492 = vmatprep.subr.mxu0 0.0
        %493 = vmatpush1.msra.mxu0 0.0
        %494 = vmatprep.subr.mxu0 0.0
        %495 = vmatpush1.msra.mxu0 0.0
        %496 = vmatprep.subr.mxu0 0.0
        %497 = vmatpush1.msra.mxu0 0.0
        %498 = vmatprep.subr.mxu0 0.0
        %499 = vmatpush1.msra.mxu0 0.0
        %500 = vmatprep.subr.mxu0 0.0
        %501 = vmatpush1.msra.mxu0 0.0
        %502 = vmatprep.subr.mxu0 0.0
        %503 = vmatpush1.msra.mxu0 0.0
        %504 = vmatprep.subr.mxu0 0.0
        %505 = vmatpush1.msra.mxu0 %v475
        %506 = vmatprep.subr.mxu0 0.0
        %507 = vmatpush1.msra.mxu0 %v474
        %508 = vmatprep.subr.mxu0 0.0
        %509 = vmatpush1.msra.mxu0 %v473
        %510 = vmatprep.subr.mxu0 0.0
        %511 = vmatpush1.msra.mxu0 %v472
        %512 = vmatprep.subr.mxu0 0.0
        %513 = vmatpush2.msra.mxu0 0.0
        %514 = vmatprep.subr.mxu0 0.0
        %515 = vmatpush2.msra.mxu0 0.0
        %516 = vmatprep.subr.mxu0 0.0
        %517 = vmatpush2.msra.mxu0 0.0
        %518 = vmatprep.subr.mxu0 0.0
        %519 = vmatpush2.msra.mxu0 0.0
        %520 = vmatprep.subr.mxu0 0.0
        %521 = vmatpush2.msra.mxu0 0.0
        %522 = vmatprep.subr.mxu0 0.0
        %523 = vmatpush2.msra.mxu0 0.0
        %524 = vmatprep.subr.mxu0 0.0
        %525 = vmatpush2.msra.mxu0 0.0
        %526 = vmatprep.subr.mxu0 0.0
        %527 = vmatpush2.msra.mxu0 0.0
        %528 = vmatprep.subr.mxu0 0.0
        %529 = vmatpush2.msra.mxu0 0.0
        %530 = vmatprep.subr.mxu0 0.0
        %531 = vmatpush2.msra.mxu0 0.0
        %532 = vmatprep.subr.mxu0 0.0
        %533 = vmatpush2.msra.mxu0 0.0
        %534 = vmatprep.subr.mxu0 0.0
        %535 = vmatpush2.msra.mxu0 0.0
        %536 = vmatprep.subr.mxu0 0.0
        %537 = vmatpush2.msra.mxu0 0.0
        %538 = vmatprep.subr.mxu0 0.0
        %539 = vmatpush2.msra.mxu0 0.0
        %540 = vmatprep.subr.mxu0 0.0
        %541 = vmatpush2.msra.mxu0 0.0
        %542 = vmatprep.subr.mxu0 0.0
        %543 = vmatpush2.msra.mxu0 0.0
        %544 = vmatprep.mubr.f32.mxu0 0.0
        %545 = vmatmul.mubr.f32.gmra.mxu0 %v478
        %v546 = vpop.f32.mrf.mxu0
        %v547 = vadd.f32 0.0, %v546
        %v548 = vpop.f32.mrf.mxu0
        %549 = vdwg.mxu0
        %v550 = vld [vmem:[#allocation7] sm:$0xff]
        %v551 = vld [vmem:[#allocation7 + $0x8] sm:$0xff]
        %v552 = vld [vmem:[#allocation7 + $0x10] sm:$0xff]
        %v553 = vld [vmem:[#allocation7 + $0x18] sm:$0xff]
        %v555 = vsel %vm476, %v470, 0
        %557 = vmatprep.subr.mxu0 0.0
        %558 = vmatpush1.msra.mxu0 0.0
        %559 = vmatprep.subr.mxu0 0.0
        %560 = vmatpush1.msra.mxu0 0.0
        %561 = vmatprep.subr.mxu0 0.0
        %562 = vmatpush1.msra.mxu0 0.0
        %563 = vmatprep.subr.mxu0 0.0
        %564 = vmatpush1.msra.mxu0 0.0
        %565 = vmatprep.subr.mxu0 0.0
        %566 = vmatpush1.msra.mxu0 0.0
        %567 = vmatprep.subr.mxu0 0.0
        %568 = vmatpush1.msra.mxu0 0.0
        %569 = vmatprep.subr.mxu0 0.0
        %570 = vmatpush1.msra.mxu0 0.0
        %571 = vmatprep.subr.mxu0 0.0
        %572 = vmatpush1.msra.mxu0 0.0
        %573 = vmatprep.subr.mxu0 0.0
        %574 = vmatpush1.msra.mxu0 0.0
        %575 = vmatprep.subr.mxu0 0.0
        %576 = vmatpush1.msra.mxu0 0.0
        %577 = vmatprep.subr.mxu0 0.0
        %578 = vmatpush1.msra.mxu0 0.0
        %579 = vmatprep.subr.mxu0 0.0
        %580 = vmatpush1.msra.mxu0 0.0
        %581 = vmatprep.subr.mxu0 0.0
        %582 = vmatpush1.msra.mxu0 %v553
        %583 = vmatprep.subr.mxu0 0.0
        %584 = vmatpush1.msra.mxu0 %v552
        %585 = vmatprep.subr.mxu0 0.0
        %586 = vmatpush1.msra.mxu0 %v551
        %587 = vmatprep.subr.mxu0 0.0
        %588 = vmatpush1.msra.mxu0 %v550
        %589 = vmatprep.subr.mxu0 0.0
        %590 = vmatpush2.msra.mxu0 0.0
        %591 = vmatprep.subr.mxu0 0.0
        %592 = vmatpush2.msra.mxu0 0.0
        %593 = vmatprep.subr.mxu0 0.0
        %594 = vmatpush2.msra.mxu0 0.0
        %595 = vmatprep.subr.mxu0 0.0
        %596 = vmatpush2.msra.mxu0 0.0
        %597 = vmatprep.subr.mxu0 0.0
        %598 = vmatpush2.msra.mxu0 0.0
        %599 = vmatprep.subr.mxu0 0.0
        %600 = vmatpush2.msra.mxu0 0.0
        %601 = vmatprep.subr.mxu0 0.0
        %602 = vmatpush2.msra.mxu0 0.0
        %603 = vmatprep.subr.mxu0 0.0
        %604 = vmatpush2.msra.mxu0 0.0
        %605 = vmatprep.subr.mxu0 0.0
        %606 = vmatpush2.msra.mxu0 0.0
        %607 = vmatprep.subr.mxu0 0.0
        %608 = vmatpush2.msra.mxu0 0.0
        %609 = vmatprep.subr.mxu0 0.0
        %610 = vmatpush2.msra.mxu0 0.0
        %611 = vmatprep.subr.mxu0 0.0
        %612 = vmatpush2.msra.mxu0 0.0
        %613 = vmatprep.subr.mxu0 0.0
        %614 = vmatpush2.msra.mxu0 0.0
        %615 = vmatprep.subr.mxu0 0.0
        %616 = vmatpush2.msra.mxu0 0.0
        %617 = vmatprep.subr.mxu0 0.0
        %618 = vmatpush2.msra.mxu0 0.0
        %619 = vmatprep.subr.mxu0 0.0
        %620 = vmatpush2.msra.mxu0 0.0
        %621 = vmatprep.mubr.f32.mxu0 0.0
        %622 = vmatmul.mubr.f32.gmra.mxu0 %v555
        %v623 = vpop.f32.mrf.mxu0
        %v624 = vadd.f32 0.0, %v623
        %v625 = vpop.f32.mrf.mxu0
        %626 = vdwg.mxu0
        %v627 = vld [vmem:[#allocation8] sm:$0xff]
        %v628 = vld [vmem:[#allocation8 + $0x8] sm:$0xff]
        %v629 = vld [vmem:[#allocation8 + $0x10] sm:$0xff]
        %v630 = vld [vmem:[#allocation8 + $0x18] sm:$0xff]
        %v632 = vsel %vm476, %v471, 0
        %634 = vmatprep.subr.mxu0 0.0
        %635 = vmatpush1.msra.mxu0 0.0
        %636 = vmatprep.subr.mxu0 0.0
        %637 = vmatpush1.msra.mxu0 0.0
        %638 = vmatprep.subr.mxu0 0.0
        %639 = vmatpush1.msra.mxu0 0.0
        %640 = vmatprep.subr.mxu0 0.0
        %641 = vmatpush1.msra.mxu0 0.0
        %642 = vmatprep.subr.mxu0 0.0
        %643 = vmatpush1.msra.mxu0 0.0
        %644 = vmatprep.subr.mxu0 0.0
        %645 = vmatpush1.msra.mxu0 0.0
        %646 = vmatprep.subr.mxu0 0.0
        %647 = vmatpush1.msra.mxu0 0.0
        %648 = vmatprep.subr.mxu0 0.0
        %649 = vmatpush1.msra.mxu0 0.0
        %650 = vmatprep.subr.mxu0 0.0
        %651 = vmatpush1.msra.mxu0 0.0
        %652 = vmatprep.subr.mxu0 0.0
        %653 = vmatpush1.msra.mxu0 0.0
        %654 = vmatprep.subr.mxu0 0.0
        %655 = vmatpush1.msra.mxu0 0.0
        %656 = vmatprep.subr.mxu0 0.0
        %657 = vmatpush1.msra.mxu0 0.0
        %658 = vmatprep.subr.mxu0 0.0
        %659 = vmatpush1.msra.mxu0 %v630
        %660 = vmatprep.subr.mxu0 0.0
        %661 = vmatpush1.msra.mxu0 %v629
        %662 = vmatprep.subr.mxu0 0.0
        %663 = vmatpush1.msra.mxu0 %v628
        %664 = vmatprep.subr.mxu0 0.0
        %665 = vmatpush1.msra.mxu0 %v627
        %666 = vmatprep.subr.mxu0 0.0
        %667 = vmatpush2.msra.mxu0 0.0
        %668 = vmatprep.subr.mxu0 0.0
        %669 = vmatpush2.msra.mxu0 0.0
        %670 = vmatprep.subr.mxu0 0.0
        %671 = vmatpush2.msra.mxu0 0.0
        %672 = vmatprep.subr.mxu0 0.0
        %673 = vmatpush2.msra.mxu0 0.0
        %674 = vmatprep.subr.mxu0 0.0
        %675 = vmatpush2.msra.mxu0 0.0
        %676 = vmatprep.subr.mxu0 0.0
        %677 = vmatpush2.msra.mxu0 0.0
        %678 = vmatprep.subr.mxu0 0.0
        %679 = vmatpush2.msra.mxu0 0.0
        %680 = vmatprep.subr.mxu0 0.0
        %681 = vmatpush2.msra.mxu0 0.0
        %682 = vmatprep.subr.mxu0 0.0
        %683 = vmatpush2.msra.mxu0 0.0
        %684 = vmatprep.subr.mxu0 0.0
        %685 = vmatpush2.msra.mxu0 0.0
        %686 = vmatprep.subr.mxu0 0.0
        %687 = vmatpush2.msra.mxu0 0.0
        %688 = vmatprep.subr.mxu0 0.0
        %689 = vmatpush2.msra.mxu0 0.0
        %690 = vmatprep.subr.mxu0 0.0
        %691 = vmatpush2.msra.mxu0 0.0
        %692 = vmatprep.subr.mxu0 0.0
        %693 = vmatpush2.msra.mxu0 0.0
        %694 = vmatprep.subr.mxu0 0.0
        %695 = vmatpush2.msra.mxu0 0.0
        %696 = vmatprep.subr.mxu0 0.0
        %697 = vmatpush2.msra.mxu0 0.0
        %698 = vmatprep.mubr.f32.mxu0 0.0
        %699 = vmatmul.mubr.f32.gmra.mxu0 %v632
        %v700 = vpop.f32.mrf.mxu0
        %v701 = vadd.f32 0.0, %v700
        %v702 = vpop.f32.mrf.mxu0
        %703 = vdwg.mxu0
        %v704 = vld [vmem:[%s8] sm:$0xff]
        %v705 = vld [vmem:[%s8 + $0x8] sm:$0xff]
        %v706 = vld [vmem:[%s8 + $0x10] sm:$0xff]
        %v707 = vld [vmem:[%s8 + $0x18] sm:$0xff]
        %v708 = vlaneseq
        %v709 = vshrl.u32 %v708, 7
        %v710 = vsub.s32 0, %v709
        %v711 = vrot.slane %v547, %v710
        %713 = vbcast.lane.b32.xlu0 %v711, 256
        %v714 = vpop.permute.xlu0 %713
        %s716 = sor.u32 256, 8
        %717 = vbcast.lane.b32.xlu0 %v711, %s716
        %v718 = vpop.permute.xlu0 %717
        %s720 = sor.u32 256, 16
        %721 = vbcast.lane.b32.xlu0 %v711, %s720
        %v722 = vpop.permute.xlu0 %721
        %s724 = sor.u32 256, 24
        %725 = vbcast.lane.b32.xlu0 %v711, %s724
        %v726 = vpop.permute.xlu0 %725
        %v727 = vmul.f32 %v714, %v704
        %v728 = vmul.f32 %v718, %v705
        %v729 = vmul.f32 %v722, %v706
        %v730 = vmul.f32 %v726, %v707
        %v732 = vsel %vm476, %v624, 0
        %734 = vmatprep.subr.mxu0 0.0
        %735 = vmatpush1.msra.mxu0 0.0
        %736 = vmatprep.subr.mxu0 0.0
        %737 = vmatpush1.msra.mxu0 0.0
        %738 = vmatprep.subr.mxu0 0.0
        %739 = vmatpush1.msra.mxu0 0.0
        %740 = vmatprep.subr.mxu0 0.0
        %741 = vmatpush1.msra.mxu0 0.0
        %742 = vmatprep.subr.mxu0 0.0
        %743 = vmatpush1.msra.mxu0 0.0
        %744 = vmatprep.subr.mxu0 0.0
        %745 = vmatpush1.msra.mxu0 0.0
        %746 = vmatprep.subr.mxu0 0.0
        %747 = vmatpush1.msra.mxu0 0.0
        %748 = vmatprep.subr.mxu0 0.0
        %749 = vmatpush1.msra.mxu0 0.0
        %750 = vmatprep.subr.mxu0 0.0
        %751 = vmatpush1.msra.mxu0 0.0
        %752 = vmatprep.subr.mxu0 0.0
        %753 = vmatpush1.msra.mxu0 0.0
        %754 = vmatprep.subr.mxu0 0.0
        %755 = vmatpush1.msra.mxu0 0.0
        %756 = vmatprep.subr.mxu0 0.0
        %757 = vmatpush1.msra.mxu0 0.0
        %758 = vmatprep.subr.mxu0 0.0
        %759 = vmatpush1.msra.mxu0 %v730
        %760 = vmatprep.subr.mxu0 0.0
        %761 = vmatpush1.msra.mxu0 %v729
        %762 = vmatprep.subr.mxu0 0.0
        %763 = vmatpush1.msra.mxu0 %v728
        %764 = vmatprep.subr.mxu0 0.0
        %765 = vmatpush1.msra.mxu0 %v727
        %766 = vmatprep.subr.mxu0 0.0
        %767 = vmatpush2.msra.mxu0 0.0
        %768 = vmatprep.subr.mxu0 0.0
        %769 = vmatpush2.msra.mxu0 0.0
        %770 = vmatprep.subr.mxu0 0.0
        %771 = vmatpush2.msra.mxu0 0.0
        %772 = vmatprep.subr.mxu0 0.0
        %773 = vmatpush2.msra.mxu0 0.0
        %774 = vmatprep.subr.mxu0 0.0
        %775 = vmatpush2.msra.mxu0 0.0
        %776 = vmatprep.subr.mxu0 0.0
        %777 = vmatpush2.msra.mxu0 0.0
        %778 = vmatprep.subr.mxu0 0.0
        %779 = vmatpush2.msra.mxu0 0.0
        %780 = vmatprep.subr.mxu0 0.0
        %781 = vmatpush2.msra.mxu0 0.0
        %782 = vmatprep.subr.mxu0 0.0
        %783 = vmatpush2.msra.mxu0 0.0
        %784 = vmatprep.subr.mxu0 0.0
        %785 = vmatpush2.msra.mxu0 0.0
        %786 = vmatprep.subr.mxu0 0.0
        %787 = vmatpush2.msra.mxu0 0.0
        %788 = vmatprep.subr.mxu0 0.0
        %789 = vmatpush2.msra.mxu0 0.0
        %790 = vmatprep.subr.mxu0 0.0
        %791 = vmatpush2.msra.mxu0 0.0
        %792 = vmatprep.subr.mxu0 0.0
        %793 = vmatpush2.msra.mxu0 0.0
        %794 = vmatprep.subr.mxu0 0.0
        %795 = vmatpush2.msra.mxu0 0.0
        %796 = vmatprep.subr.mxu0 0.0
        %797 = vmatpush2.msra.mxu0 0.0
        %798 = vmatprep.mubr.f32.mxu0 0.0
        %799 = vmatmul.mubr.f32.gmra.mxu0 %v732
        %v800 = vpop.f32.mrf.mxu0
        %v801 = vadd.f32 0.0, %v800
        %v802 = vpop.f32.mrf.mxu0
        %803 = vdwg.mxu0
        %804 = vxpose.xlu0.b32.start [1/16] %v801, 128
        %805 = vxpose.xlu0.b32.cont [2/16] 0.0, 128
        %806 = vxpose.xlu0.b32.cont [3/16] 0.0, 128
        %807 = vxpose.xlu0.b32.cont [4/16] 0.0, 128
        %808 = vxpose.xlu0.b32.cont [5/16] 0.0, 128
        %809 = vxpose.xlu0.b32.cont [6/16] 0.0, 128
        %810 = vxpose.xlu0.b32.cont [7/16] 0.0, 128
        %811 = vxpose.xlu0.b32.cont [8/16] 0.0, 128
        %812 = vxpose.xlu0.b32.cont [9/16] 0.0, 128
        %813 = vxpose.xlu0.b32.cont [10/16] 0.0, 128
        %814 = vxpose.xlu0.b32.cont [11/16] 0.0, 128
        %815 = vxpose.xlu0.b32.cont [12/16] 0.0, 128
        %816 = vxpose.xlu0.b32.cont [13/16] 0.0, 128
        %817 = vxpose.xlu0.b32.cont [14/16] 0.0, 128
        %818 = vxpose.xlu0.b32.cont [15/16] 0.0, 128
        %819 = vxpose.xlu0.b32.end [16/16] 0.0, 128
        %v820 = vpop.trf.xlu0
        %v821 = vpop.trf.xlu0
        %v822 = vpop.trf.xlu0
        %v823 = vpop.trf.xlu0
        %v824 = vpop.trf.xlu0
        %v825 = vpop.trf.xlu0
        %v826 = vpop.trf.xlu0
        %v827 = vpop.trf.xlu0
        %v828 = vpop.trf.xlu0
        %v829 = vpop.trf.xlu0
        %v830 = vpop.trf.xlu0
        %v831 = vpop.trf.xlu0
        %v832 = vpop.trf.xlu0
        %v833 = vpop.trf.xlu0
        %v834 = vpop.trf.xlu0
        %v835 = vpop.trf.xlu0
        %vm836 = vcmask 60416
        %v837 = vsel %vm836, %v820, -inf
        %838 = vmax.xlane.f32.xlu0 %v837
        %v839 = vpop.xlane.xlu0 %838
        %v840 = vsub.f32 %v820, %v839
        %v841 = vmul.f32 %v840, 1.442695
        %v842 = vpow.pop %v841
        %v843 = vsel %vm836, %v842, 0.0
        %844 = vadd.xlane.f32.xlu0 %v843
        %v845 = vpop.xlane.xlu0 %844
        %v846 = vrcp.pop %v845
        %v847 = vmul.f32 %v842, %v846
        %vm848 = vcmask 64512
        %v850 = vsel %vm848, %v847, 0
        %852 = vmatprep.subr.mxu0 0.0
        %853 = vmatpush1.msra.mxu0 0.0
        %854 = vmatprep.subr.mxu0 0.0
        %855 = vmatpush1.msra.mxu0 0.0
        %856 = vmatprep.subr.mxu0 0.0
        %857 = vmatpush1.msra.mxu0 0.0
        %858 = vmatprep.subr.mxu0 0.0
        %859 = vmatpush1.msra.mxu0 0.0
        %860 = vmatprep.subr.mxu0 0.0
        %861 = vmatpush1.msra.mxu0 0.0
        %862 = vmatprep.subr.mxu0 0.0
        %863 = vmatpush1.msra.mxu0 0.0
        %864 = vmatprep.subr.mxu0 0.0
        %865 = vmatpush1.msra.mxu0 0.0
        %866 = vmatprep.subr.mxu0 0.0
        %867 = vmatpush1.msra.mxu0 0.0
        %868 = vmatprep.subr.mxu0 0.0
        %869 = vmatpush1.msra.mxu0 0.0
        %870 = vmatprep.subr.mxu0 0.0
        %871 = vmatpush1.msra.mxu0 0.0
        %872 = vmatprep.subr.mxu0 0.0
        %873 = vmatpush1.msra.mxu0 0.0
        %874 = vmatprep.subr.mxu0 0.0
        %875 = vmatpush1.msra.mxu0 0.0
        %876 = vmatprep.subr.mxu0 0.0
        %877 = vmatpush1.msra.mxu0 0.0
        %878 = vmatprep.subr.mxu0 0.0
        %879 = vmatpush1.msra.mxu0 0.0
        %880 = vmatprep.subr.mxu0 0.0
        %881 = vmatpush1.msra.mxu0 0.0
        %882 = vmatprep.subr.mxu0 0.0
        %883 = vmatpush1.msra.mxu0 %v701
        %884 = vmatprep.subr.mxu0 0.0
        %885 = vmatpush2.msra.mxu0 0.0
        %886 = vmatprep.subr.mxu0 0.0
        %887 = vmatpush2.msra.mxu0 0.0
        %888 = vmatprep.subr.mxu0 0.0
        %889 = vmatpush2.msra.mxu0 0.0
        %890 = vmatprep.subr.mxu0 0.0
        %891 = vmatpush2.msra.mxu0 0.0
        %892 = vmatprep.subr.mxu0 0.0
        %893 = vmatpush2.msra.mxu0 0.0
        %894 = vmatprep.subr.mxu0 0.0
        %895 = vmatpush2.msra.mxu0 0.0
        %896 = vmatprep.subr.mxu0 0.0
        %897 = vmatpush2.msra.mxu0 0.0
        %898 = vmatprep.subr.mxu0 0.0
        %899 = vmatpush2.msra.mxu0 0.0
        %900 = vmatprep.subr.mxu0 0.0
        %901 = vmatpush2.msra.mxu0 0.0
        %902 = vmatprep.subr.mxu0 0.0
        %903 = vmatpush2.msra.mxu0 0.0
        %904 = vmatprep.subr.mxu0 0.0
        %905 = vmatpush2.msra.mxu0 0.0
        %906 = vmatprep.subr.mxu0 0.0
        %907 = vmatpush2.msra.mxu0 0.0
        %908 = vmatprep.subr.mxu0 0.0
        %909 = vmatpush2.msra.mxu0 0.0
        %910 = vmatprep.subr.mxu0 0.0
        %911 = vmatpush2.msra.mxu0 0.0
        %912 = vmatprep.subr.mxu0 0.0
        %913 = vmatpush2.msra.mxu0 0.0
        %914 = vmatprep.subr.mxu0 0.0
        %915 = vmatpush2.msra.mxu0 0.0
        %916 = vmatprep.mubr.f32.mxu0 0.0
        %917 = vmatmul.mubr.f32.gmra.mxu0 %v850
        %v918 = vpop.f32.mrf.mxu0
        %v919 = vadd.f32 0.0, %v918
        %v920 = vpop.f32.mrf.mxu0
        %921 = vdwg.mxu0
        %v922 = vld [vmem:[%s9] sm:$0xf]
        %v923 = vmul.f32 %v919, %v922
        %vm924 = vcmask 257024
        %v925 = vsel %vm924, %v923, 0.0
        %v926 = vrot.slane %v925, 4
        %v927 = vadd.f32 %v925, %v926
        %v928 = vrot.slane %v927, 2
        %v929 = vadd.f32 %v927, %v928
        %v930 = vrot.slane %v929, 1
        %v931 = vadd.f32 %v929, %v930
        %v932 = vld [vmem:[#allocation10] sm:$0xff]
        %v933 = vld [vmem:[#allocation10 + $0x8] sm:$0xff]
        %v934 = vld [vmem:[#allocation10 + $0x10] sm:$0xff]
        %v935 = vld [vmem:[#allocation10 + $0x18] sm:$0xff]
        %v936 = vld [vmem:[%s7] sm:$0x1]
        %v938 = vsel %vm476, %v931, 0
        %940 = vmatprep.subr.mxu0 0.0
        %941 = vmatpush1.msra.mxu0 0.0
        %942 = vmatprep.subr.mxu0 0.0
        %943 = vmatpush1.msra.mxu0 0.0
        %944 = vmatprep.subr.mxu0 0.0
        %945 = vmatpush1.msra.mxu0 0.0
        %946 = vmatprep.subr.mxu0 0.0
        %947 = vmatpush1.msra.mxu0 0.0
        %948 = vmatprep.subr.mxu0 0.0
        %949 = vmatpush1.msra.mxu0 0.0
        %950 = vmatprep.subr.mxu0 0.0
        %951 = vmatpush1.msra.mxu0 0.0
        %952 = vmatprep.subr.mxu0 0.0
        %953 = vmatpush1.msra.mxu0 0.0
        %954 = vmatprep.subr.mxu0 0.0
        %955 = vmatpush1.msra.mxu0 0.0
        %956 = vmatprep.subr.mxu0 0.0
        %957 = vmatpush1.msra.mxu0 0.0
        %958 = vmatprep.subr.mxu0 0.0
        %959 = vmatpush1.msra.mxu0 0.0
        %960 = vmatprep.subr.mxu0 0.0
        %961 = vmatpush1.msra.mxu0 0.0
        %962 = vmatprep.subr.mxu0 0.0
        %963 = vmatpush1.msra.mxu0 0.0
        %964 = vmatprep.subr.mxu0 0.0
        %965 = vmatpush1.msra.mxu0 %v935
        %966 = vmatprep.subr.mxu0 0.0
        %967 = vmatpush1.msra.mxu0 %v934
        %968 = vmatprep.subr.mxu0 0.0
        %969 = vmatpush1.msra.mxu0 %v933
        %970 = vmatprep.subr.mxu0 0.0
        %971 = vmatpush1.msra.mxu0 %v932
        %972 = vmatprep.subr.mxu0 0.0
        %973 = vmatpush2.msra.mxu0 0.0
        %974 = vmatprep.subr.mxu0 0.0
        %975 = vmatpush2.msra.mxu0 0.0
        %976 = vmatprep.subr.mxu0 0.0
        %977 = vmatpush2.msra.mxu0 0.0
        %978 = vmatprep.subr.mxu0 0.0
        %979 = vmatpush2.msra.mxu0 0.0
        %980 = vmatprep.subr.mxu0 0.0
        %981 = vmatpush2.msra.mxu0 0.0
        %982 = vmatprep.subr.mxu0 0.0
        %983 = vmatpush2.msra.mxu0 0.0
        %984 = vmatprep.subr.mxu0 0.0
        %985 = vmatpush2.msra.mxu0 0.0
        %986 = vmatprep.subr.mxu0 0.0
        %987 = vmatpush2.msra.mxu0 0.0
        %988 = vmatprep.subr.mxu0 0.0
        %989 = vmatpush2.msra.mxu0 0.0
        %990 = vmatprep.subr.mxu0 0.0
        %991 = vmatpush2.msra.mxu0 0.0
        %992 = vmatprep.subr.mxu0 0.0
        %993 = vmatpush2.msra.mxu0 0.0
        %994 = vmatprep.subr.mxu0 0.0
        %995 = vmatpush2.msra.mxu0 0.0
        %996 = vmatprep.subr.mxu0 0.0
        %997 = vmatpush2.msra.mxu0 0.0
        %998 = vmatprep.subr.mxu0 0.0
        %999 = vmatpush2.msra.mxu0 0.0
        %1000 = vmatprep.subr.mxu0 0.0
        %1001 = vmatpush2.msra.mxu0 0.0
        %1002 = vmatprep.subr.mxu0 0.0
        %1003 = vmatpush2.msra.mxu0 0.0
        %1004 = vmatprep.mubr.f32.mxu0 0.0
        %1005 = vmatmul.mubr.f32.gmra.mxu0 %v938
        %v1006 = vpop.f32.mrf.mxu0
        %v1007 = vadd.f32 %v936, %v1006
        %v1008 = vpop.f32.mrf.mxu0
        %1009 = vdwg.mxu0
        %v1010 = vlaneseq
        %v1011 = vshrl.u32 %v1010, 7
        %v1012 = vsub.s32 0, %v1011
        %v1013 = vrot.slane %v1007, %v1012
        %v1014 = vadd.f32 %v1013, %v471
        %1015 = vst.msk [vmem:[%s465] sm:$0xff] %vm476, %v1014
        %s1016 = sand.u32 %s264, 1
        %s1017 = scalar_lea.sflag [#allocation4], %s1016
        %s1018 = sand.u32 %s264, 1
        %s1019 = smul.addr %s1018, 8
        %s1020 = scalar_lea.vmem [#allocation11], %s1019
        // Predicated region
        $region81: #{tpu_custom_call.1} parent=59 // pred_check
          %p1021 = pneg %p274
        $region82: #{tpu_custom_call.1} parent=59 // pred_check_branch
          %1023 = sbr.rel (%p1021) target = $region84
        $region83: #{tpu_custom_call.1} parent=59 // pred_region
          %s1025 = ssub.s32 128, 128
          %1026 = vsyncadd %s1017, %s1025
          %s1027 = smul.addr %s31, 128
          %s1028 = scalar_lea.hbm %s10, %s1027
          %s1030 = sshll.u32 %s1020, 4
          %s1031 = int_to_ptr.vmem [resolvable:$true] %s1030
          %1033 = dma.vmem_to_hbm [thread:$0]  %s1031, 128, %s1028, %s1017
        $region84: #{tpu_custom_call.1} parent=59 // pred_fallthru
          _
      $region60: #{tpu_custom_call.1} parent=5 // pred_fallthru
        _
      %p1034 = scmp.le.s32.totalorder 2, %s26
      // Predicated region
      $region85: #{tpu_custom_call.1} parent=5 // pred_check
        %p1035 = pneg %p1034
      $region86: #{tpu_custom_call.1} parent=5 // pred_check_branch
        %1037 = sbr.rel (%p1035) target = $region88
      $region87: #{tpu_custom_call.1} parent=5 // pred_region
        %s1038 = ssub.s32 %s26, 2
        // Predicated region
        $region89: #{tpu_custom_call.1} parent=87 // pred_check
          %p1039 = pneg %p280
        $region90: #{tpu_custom_call.1} parent=87 // pred_check_branch
          %1041 = sbr.rel (%p1039) target = $region92
        $region91: #{tpu_custom_call.1} parent=87 // pred_region
          %s1042 = sand.u32 %s265, 1
          %s1043 = scalar_lea.sflag [#allocation4], %s1042
          %s1044 = sand.u32 %s265, 1
          %s1045 = smul.addr %s1044, 8
          %s1046 = scalar_lea.vmem [#allocation11], %s1045
          %1047 = dma.done %s1043, 128
        $region92: #{tpu_custom_call.1} parent=87 // pred_fallthru
          _
      $region88: #{tpu_custom_call.1} parent=5 // pred_fallthru
        _
    $region6: #{tpu_custom_call.1} parent=1 // loop_footer
      %s30 = sadd.s32 1, %s26
    $region7: #{tpu_custom_call.1} parent=1 // loop_footer_branch
      %25 = sbr.rel target = $region3
    $region8: #{tpu_custom_call.1} parent=1 // loop_exit
      _
    %1048 = vsyncpa [#allocation3], 1
    %s1049 = scalar_lea.sflag [#allocation3], 1
    %1050 = vsyncpa %s1049, 1
    %1051 = vsyncpa [#allocation6], 1
    %s1052 = scalar_lea.sflag [#allocation6], 1
    %1053 = vsyncpa %s1052, 1
    %1054 = vsyncpa [#allocation9], 1
    %1055 = vsyncpa [#allocation4], 1
    %s1056 = scalar_lea.sflag [#allocation4], 1
    %1057 = vsyncpa %s1056, 1

</llo_original>
